<compile_context>
chip_gen: v5e
topology: v5e:2x2
jax: 0.10.0
libtpu: 0.0.40
codegen_flags: <defaults>
</compile_context>

<pallas_src>
import functools

import numpy as np
import jax
import jax.numpy as jnp
from jax.experimental import pallas as pl
from jax.experimental.pallas import tpu as pltpu  # noqa: F401  (TPU backend)


# ---------------------------------------------------------------------------
# Fused kernel
# ---------------------------------------------------------------------------

def _pose_encoder_kernel(
    x_ref,                                   # (n*length, dim) stacked input
    m1_ref, m2_ref, sel3_ref, sel2_ref,      # precomputed masks / selectors
    w1_ref, g1_ref, be1_ref,
    w2_ref, g2_ref, be2_ref,
    w3_ref, g3_ref, be3_ref,
    w4_ref, b4_ref,
    fw1_ref, fb1_ref, fg1_ref, fbe1_ref,
    fw2_ref, fb2_ref, fg2_ref, fbe2_ref,
    fw3_ref, fb3_ref,
    wh_ref, bh_ref,
    out_ref,
    *, n_batch, length, dim, base,
):
    f32 = jnp.float32
    eps = 1e-5
    S0 = length
    L1 = length - 2            # conv1: k=3 s=1
    L2 = L1 - 2                # conv2: k=3 s=1
    L3 = (L2 - 4) // 2 + 1     # conv3: k=4 s=2
    L4 = L3 - 2                # conv4: k=3 s=1
    C2 = 2 * base

    def conv_taps(x, w_ref, k, cin, rows_out):
        """Stride-1 Conv1d over a batch-stacked slab: k shifted dots.
        Plain acc = acc + dot chains so v7x can map them onto the MRB
        in-place accumulate (MRF drain on v5e/v6e)."""
        acc = jnp.dot(x[0:rows_out, :], w_ref[0:cin, :],
                      preferred_element_type=f32)
        for j in range(1, k):
            acc = acc + jnp.dot(x[j:j + rows_out, :],
                                w_ref[j * cin:(j + 1) * cin, :],
                                preferred_element_type=f32)
        return acc

    def bn_lrelu(y, gamma, beta, slope, count, mask=None):
        """Training-mode BatchNorm1d (+LeakyReLU) on a stacked slab.  `mask`
        (rows, 1) marks rows belonging to a real (batch, position) pair;
        batch-boundary garbage rows are excluded from the statistics but still
        normalized (harmless: they are never read as valid data downstream)."""
        inv = 1.0 / float(count)
        ym = y if mask is None else y * mask
        mean = jnp.sum(ym, axis=0, keepdims=True) * inv
        cen = y - mean
        d = cen if mask is None else cen * mask
        var = jnp.sum(d * d, axis=0, keepdims=True) * inv
        scale = jax.lax.rsqrt(var + eps) * gamma
        z = cen * scale + beta
        if slope != 1.0:   # LeakyReLU(True) => slope 1.0 => identity: skip select
            z = jnp.where(z >= 0.0, z, slope * z)
        return z

    x0 = x_ref[...]                                                   # (n*S0, dim)

    # conv1 (bias cancelled exactly by the BN mean subtraction)
    y = conv_taps(x0, w1_ref, 3, dim, n_batch * S0 - 2)               # (n*S0-2, b)
    y = bn_lrelu(y, g1_ref[...], be1_ref[...], 0.2, n_batch * L1, m1_ref[...])

    # conv2
    y = conv_taps(y, w2_ref, 3, base, n_batch * S0 - 4)               # (n*S0-4, 2b)
    y = bn_lrelu(y, g2_ref[...], be2_ref[...], 0.2, n_batch * L2, m2_ref[...])

    # conv3 (k=4, s=2): stride-1 taps, then ONE precomputed 0/1 matmul that
    # selects the even output rows AND compacts the batch segments.
    y = conv_taps(y, w3_ref, 4, C2, n_batch * S0 - 7)                 # (n*S0-7, 2b)
    y = jnp.dot(sel3_ref[...], y, preferred_element_type=f32)         # (n*L3, 2b)
    y = bn_lrelu(y, g3_ref[...], be3_ref[...], 0.2, n_batch * L3)

    # conv4 (bias kept: no BN afterwards)
    y = conv_taps(y, w4_ref, 3, C2, n_batch * L3 - 2) + b4_ref[...]   # (n*L3-2, b)

    # fc1 with torch's channel-major flatten folded into fw1's row order:
    # accumulation row r = sum_l y[r+l] @ fw1p[l*base:(l+1)*base]; rows
    # r = b*L3 are the per-batch results -> extract with one tiny matmul.
    rows = (n_batch - 1) * L3 + 1
    acc = conv_taps(y, fw1_ref, L4, base, rows)                       # (rows, 4b)
    m = jnp.dot(sel2_ref[...], acc, preferred_element_type=f32) + fb1_ref[...]
    m = bn_lrelu(m, fg1_ref[...], fbe1_ref[...], 1.0, n_batch)        # (n, 4b)

    m = jnp.dot(m, fw2_ref[...], preferred_element_type=f32) + fb2_ref[...]
    m = bn_lrelu(m, fg2_ref[...], fbe2_ref[...], 1.0, n_batch)        # (n, 2b)

    m = jnp.dot(m, fw3_ref[...], preferred_element_type=f32) + fb3_ref[...]

    # fused [fc_mu | fc_logvar] head + ONE full-block output store
    out_ref[...] = (jnp.dot(m, wh_ref[...], preferred_element_type=f32)
                    + bh_ref[...])


# ---------------------------------------------------------------------------
# One-time packing (outside jit) + jitted forward
# ---------------------------------------------------------------------------

def _zero_map(ndim):
    return lambda: (0,) * ndim


def prepare_inputs(params, n, length, dim):
    """One-time packing of weights and constant masks/selection matrices."""
    base = int(params["w1"].shape[0])
    S0, L1 = length, length - 2
    L2 = L1 - 2
    L3 = (L2 - 4) // 2 + 1
    L4 = L3 - 2
    assert int(params["fw1"].shape[0]) == base * L4, "out_net in_features mismatch"

    def taps(w):   # (C_out, C_in, k) -> (k*C_in, C_out); block j == w[:, :, j].T
        k = w.shape[2]
        return jnp.transpose(w, (2, 1, 0)).reshape(k * w.shape[1], w.shape[0])

    def row(v):
        return jnp.asarray(v, jnp.float32).reshape(1, -1)

    # valid-row masks for the stacked stride-1 conv outputs (windows that stay
    # inside one batch segment)
    r1 = np.arange(n * S0 - 2)
    m1 = ((r1 % S0) < L1).astype(np.float32)[:, None]
    r2 = np.arange(n * S0 - 4)
    m2 = ((r2 % S0) < L2).astype(np.float32)[:, None]

    # conv3 stride-2 selection + batch compaction (single 0/1 matmul operand)
    sel3 = np.zeros((n * L3, n * S0 - 7), np.float32)
    for b in range(n):
        for t in range(L3):
            sel3[b * L3 + t, b * S0 + 2 * t] = 1.0

    # fc1 per-batch row extraction
    sel2 = np.zeros((n, (n - 1) * L3 + 1), np.float32)
    for b in range(n):
        sel2[b, b * L3] = 1.0

    # torch flattens (N, C, L4) channel-major (idx = c*L4 + l); permute fw1's
    # rows once so the kernel consumes (l, c)-ordered feature rows directly.
    fw1p = (params["fw1"].reshape(base, L4, 4 * base)
            .transpose(1, 0, 2).reshape(L4 * base, 4 * base))

    w_head = jnp.concatenate([params["mw"], params["lw"]], axis=1)   # (b, 2b)
    b_head = jnp.concatenate([params["mb"], params["lb"]], axis=0)   # (2b,)

    consts = (
        jnp.asarray(m1), jnp.asarray(m2), jnp.asarray(sel3), jnp.asarray(sel2),
        taps(params["w1"]), row(params["g1"]), row(params["be1"]),
        taps(params["w2"]), row(params["g2"]), row(params["be2"]),
        taps(params["w3"]), row(params["g3"]), row(params["be3"]),
        taps(params["w4"]), row(params["b4"]),
        fw1p, row(params["fb1"]), row(params["fg1"]), row(params["fbe1"]),
        jnp.asarray(params["fw2"], jnp.float32), row(params["fb2"]),
        row(params["fg2"]), row(params["fbe2"]),
        jnp.asarray(params["fw3"], jnp.float32), row(params["fb3"]),
        w_head, row(b_head),
    )
    return consts


@jax.jit
def pose_encoder_conv_forward(poses, consts):
    """poses: (N, T, dim) -> (z, mu, logvar), matching PoseEncoderConv.forward
    (train-mode BatchNorm, variational_encoding=None)."""
    n, length, dim = poses.shape
    base = consts[4].shape[1]          # w1 taps: (3*dim, base)
    x = poses.astype(jnp.float32).reshape(n * length, dim)

    kernel = functools.partial(
        _pose_encoder_kernel, n_batch=n, length=length, dim=dim, base=base)

    inputs = (x,) + tuple(consts)
    # Whole problem (weights + activations) is <1 MiB -> single grid-less
    # invocation with full-array VMEM blocks on v5e/v6e/v7x.  If N or L grow
    # ~100x, add a batch grid axis; using v7x's second TensorCore would need a
    # cross-core BN partial-sum (CMEM/VMEM_SHARED + core_barrier).
    out = pl.pallas_call(
        kernel,
        out_shape=jax.ShapeDtypeStruct((n, 2 * base), jnp.float32),
        in_specs=[pl.BlockSpec(a.shape, _zero_map(a.ndim)) for a in inputs],
        out_specs=pl.BlockSpec((n, 2 * base), _zero_map(2)),
    )(*inputs)

    mu = out[:, :base]
    logvar = out[:, base:]
    z = mu  # variational_encoding is None in the reference forward -> z = mu
    # TODO(synk): reparameterize() (torch.randn_like) branch only taken when
    # variational_encoding is truthy; not exercised here.
    return z, mu, logvar


# ---------------------------------------------------------------------------
# Deterministic parameter init (shapes from PoseEncoderConv.__init__)
# ---------------------------------------------------------------------------

def init_params(key, dim, length, base=32):
    def _uniform(k, shape, fan_in):
        bound = 1.0 / jnp.sqrt(jnp.float32(fan_in))
        return jax.random.uniform(k, shape, jnp.float32, -bound, bound)

    L1 = length - 2
    L2 = L1 - 2
    L3 = (L2 - 4) // 2 + 1
    L4 = L3 - 2
    flat_in = base * L4

    keys = jax.random.split(key, 18)
    p = {}
    # conv weights in PyTorch layout (C_out, C_in, k).  b1/b2/b3 exist for
    # interface parity but are mathematically cancelled by the following BN.
    p["w1"] = _uniform(keys[0], (base, dim, 3), dim * 3)
    p["b1"] = _uniform(keys[1], (base,), dim * 3)
    p["w2"] = _uniform(keys[2], (base * 2, base, 3), base * 3)
    p["b2"] = _uniform(keys[3], (base * 2,), base * 3)
    p["w3"] = _uniform(keys[4], (base * 2, base * 2, 4), base * 2 * 4)
    p["b3"] = _uniform(keys[5], (base * 2,), base * 2 * 4)
    p["w4"] = _uniform(keys[6], (base, base * 2, 3), base * 2 * 3)
    p["b4"] = _uniform(keys[7], (base,), base * 2 * 3)
    for name, c in (("1", base), ("2", base * 2), ("3", base * 2)):
        p["g" + name] = jnp.ones((c,), jnp.float32)
        p["be" + name] = jnp.zeros((c,), jnp.float32)
    # out_net linears, stored as (in, out) for x @ W
    p["fw1"] = _uniform(keys[8], (flat_in, base * 4), flat_in)
    p["fb1"] = _uniform(keys[9], (base * 4,), flat_in)
    p["fg1"] = jnp.ones((base * 4,), jnp.float32)
    p["fbe1"] = jnp.zeros((base * 4,), jnp.float32)
    p["fw2"] = _uniform(keys[10], (base * 4, base * 2), base * 4)
    p["fb2"] = _uniform(keys[11], (base * 2,), base * 4)
    p["fg2"] = jnp.ones((base * 2,), jnp.float32)
    p["fbe2"] = jnp.zeros((base * 2,), jnp.float32)
    p["fw3"] = _uniform(keys[12], (base * 2, base), base * 2)
    p["fb3"] = _uniform(keys[13], (base,), base * 2)
    p["mw"] = _uniform(keys[14], (base, base), base)
    p["mb"] = _uniform(keys[15], (base,), base)
    p["lw"] = _uniform(keys[16], (base, base), base)
    p["lb"] = _uniform(keys[17], (base,), base)
    return p


# ---------------------------------------------------------------------------
# Pure-JAX reference (same math as the PyTorch module, train-mode BN)
# ---------------------------------------------------------------------------

def _reference_forward(poses, params):
    eps = 1e-5
    x = jnp.transpose(poses.astype(jnp.float32), (0, 2, 1))     # (N, C, L)

    def conv1d(h, w, b, stride=1):
        o = jax.lax.conv_general_dilated(
            h, w, window_strides=(stride,), padding="VALID",
            dimension_numbers=("NCH", "OIH", "NCH"))
        return o + b[None, :, None]

    def bn(h, gamma, beta):
        axes = (0, 2) if h.ndim == 3 else (0,)
        mean = jnp.mean(h, axis=axes, keepdims=True)
        var = jnp.mean((h - mean) ** 2, axis=axes, keepdims=True)
        g = gamma.reshape((1, -1) + (1,) * (h.ndim - 2))
        be = beta.reshape((1, -1) + (1,) * (h.ndim - 2))
        return (h - mean) / jnp.sqrt(var + eps) * g + be

    def lrelu(h, s):
        return jnp.where(h >= 0, h, s * h)

    h = lrelu(bn(conv1d(x, params["w1"], params["b1"]), params["g1"], params["be1"]), 0.2)
    h = lrelu(bn(conv1d(h, params["w2"], params["b2"]), params["g2"], params["be2"]), 0.2)
    h = lrelu(bn(conv1d(h, params["w3"], params["b3"], 2), params["g3"], params["be3"]), 0.2)
    h = conv1d(h, params["w4"], params["b4"])                     # (N, base, L4)
    flat = h.reshape(h.shape[0], -1)                              # channel-major flatten
    m = bn(flat @ params["fw1"] + params["fb1"], params["fg1"], params["fbe1"])
    m = bn(m @ params["fw2"] + params["fb2"], params["fg2"], params["fbe2"])
    m = m @ params["fw3"] + params["fb3"]
    mu = m @ params["mw"] + params["mb"]
    logvar = m @ params["lw"] + params["lb"]
    return mu, logvar


if __name__ == "__main__":
    BATCH, LENGTH, DIM, BASE = 2, 34, 16, 32   # length=34 -> 12*base flat features
    key = jax.random.PRNGKey(0)
    k_in, k_par = jax.random.split(key)
    poses = jax.random.normal(k_in, (BATCH, LENGTH, DIM), jnp.float32)
    params = init_params(k_par, DIM, LENGTH, BASE)

    consts = prepare_inputs(params, BATCH, LENGTH, DIM)   # one-time packing, outside jit

    z, mu, logvar = pose_encoder_conv_forward(poses, consts)
    jax.block_until_ready((z, mu, logvar))

    assert z.shape == (BATCH, BASE)
    assert mu.shape == (BATCH, BASE)
    assert logvar.shape == (BATCH, BASE)
    assert bool(jnp.isfinite(mu).all()) and bool(jnp.isfinite(logvar).all())

    # sanity check against the pure-JAX reference of the PyTorch module
    mu_ref, logvar_ref = _reference_forward(poses, params)
    assert jnp.allclose(mu, mu_ref, rtol=3e-2, atol=3e-2), "mu mismatch vs reference"
    assert jnp.allclose(logvar, logvar_ref, rtol=3e-2, atol=3e-2), "logvar mismatch vs reference"

    print("KERNEL_OK")
</pallas_src>

<mosaic_0001>
module attributes {stable_mosaic.version = 11 : i64} {
  func.func @_pose_encoder_kernel(%arg0: memref<68x16xf32, #tpu.memory_space<vmem>>, %arg1: memref<66x1xf32, #tpu.memory_space<vmem>>, %arg2: memref<64x1xf32, #tpu.memory_space<vmem>>, %arg3: memref<28x61xf32, #tpu.memory_space<vmem>>, %arg4: memref<2x15xf32, #tpu.memory_space<vmem>>, %arg5: memref<48x32xf32, #tpu.memory_space<vmem>>, %arg6: memref<1x32xf32, #tpu.memory_space<vmem>>, %arg7: memref<1x32xf32, #tpu.memory_space<vmem>>, %arg8: memref<96x64xf32, #tpu.memory_space<vmem>>, %arg9: memref<1x64xf32, #tpu.memory_space<vmem>>, %arg10: memref<1x64xf32, #tpu.memory_space<vmem>>, %arg11: memref<256x64xf32, #tpu.memory_space<vmem>>, %arg12: memref<1x64xf32, #tpu.memory_space<vmem>>, %arg13: memref<1x64xf32, #tpu.memory_space<vmem>>, %arg14: memref<192x32xf32, #tpu.memory_space<vmem>>, %arg15: memref<1x32xf32, #tpu.memory_space<vmem>>, %arg16: memref<384x128xf32, #tpu.memory_space<vmem>>, %arg17: memref<1x128xf32, #tpu.memory_space<vmem>>, %arg18: memref<1x128xf32, #tpu.memory_space<vmem>>, %arg19: memref<1x128xf32, #tpu.memory_space<vmem>>, %arg20: memref<128x64xf32, #tpu.memory_space<vmem>>, %arg21: memref<1x64xf32, #tpu.memory_space<vmem>>, %arg22: memref<1x64xf32, #tpu.memory_space<vmem>>, %arg23: memref<1x64xf32, #tpu.memory_space<vmem>>, %arg24: memref<64x32xf32, #tpu.memory_space<vmem>>, %arg25: memref<1x32xf32, #tpu.memory_space<vmem>>, %arg26: memref<32x64xf32, #tpu.memory_space<vmem>>, %arg27: memref<1x64xf32, #tpu.memory_space<vmem>>, %arg28: memref<2x64xf32, #tpu.memory_space<vmem>>) attributes {dimension_semantics = [], scalar_prefetch = 0 : i64, scratch_operands = 0 : i64, tpu.core_type = #tpu.core_type<tc>} {
    %c0 = arith.constant 0 : index
    %c0_0 = arith.constant 0 : index
    %0 = vector.load %arg0[%c0, %c0_0] : memref<68x16xf32, #tpu.memory_space<vmem>>, vector<68x16xf32>
    %1 = vector.extract_strided_slice %0 {offsets = [0, 0], sizes = [66, 16], strides = [1, 1]} : vector<68x16xf32> to vector<66x16xf32>
    %c0_1 = arith.constant 0 : index
    %c0_2 = arith.constant 0 : index
    %2 = vector.load %arg5[%c0_1, %c0_2] : memref<48x32xf32, #tpu.memory_space<vmem>>, vector<16x32xf32>
    %cst = arith.constant dense<0.000000e+00> : vector<66x32xf32>
    %3 = tpu.matmul %1, %2, %cst {dimension_numbers = #tpu.dot_dimension_numbers<[1], [0], [0], [1], [0, 0, 1, 1], [], []>} : vector<66x16xf32>, vector<16x32xf32>, vector<66x32xf32> -> vector<66x32xf32>
    %4 = vector.extract_strided_slice %0 {offsets = [1, 0], sizes = [66, 16], strides = [1, 1]} : vector<68x16xf32> to vector<66x16xf32>
    %c16 = arith.constant 16 : index
    %c0_3 = arith.constant 0 : index
    %5 = vector.load %arg5[%c16, %c0_3] : memref<48x32xf32, #tpu.memory_space<vmem>>, vector<16x32xf32>
    %cst_4 = arith.constant dense<0.000000e+00> : vector<66x32xf32>
    %6 = tpu.matmul %4, %5, %cst_4 {dimension_numbers = #tpu.dot_dimension_numbers<[1], [0], [0], [1], [0, 0, 1, 1], [], []>} : vector<66x16xf32>, vector<16x32xf32>, vector<66x32xf32> -> vector<66x32xf32>
    %7 = arith.addf %3, %6 : vector<66x32xf32>
    %8 = vector.extract_strided_slice %0 {offsets = [2, 0], sizes = [66, 16], strides = [1, 1]} : vector<68x16xf32> to vector<66x16xf32>
    %c32 = arith.constant 32 : index
    %c0_5 = arith.constant 0 : index
    %9 = vector.load %arg5[%c32, %c0_5] : memref<48x32xf32, #tpu.memory_space<vmem>>, vector<16x32xf32>
    %cst_6 = arith.constant dense<0.000000e+00> : vector<66x32xf32>
    %10 = tpu.matmul %8, %9, %cst_6 {dimension_numbers = #tpu.dot_dimension_numbers<[1], [0], [0], [1], [0, 0, 1, 1], [], []>} : vector<66x16xf32>, vector<16x32xf32>, vector<66x32xf32> -> vector<66x32xf32>
    %11 = arith.addf %7, %10 : vector<66x32xf32>
    %c0_7 = arith.constant 0 : index
    %c0_8 = arith.constant 0 : index
    %12 = vector.load %arg6[%c0_7, %c0_8] : memref<1x32xf32, #tpu.memory_space<vmem>>, vector<1x32xf32>
    %c0_9 = arith.constant 0 : index
    %c0_10 = arith.constant 0 : index
    %13 = vector.load %arg7[%c0_9, %c0_10] : memref<1x32xf32, #tpu.memory_space<vmem>>, vector<1x32xf32>
    %c0_11 = arith.constant 0 : index
    %c0_12 = arith.constant 0 : index
    %14 = vector.load %arg1[%c0_11, %c0_12] : memref<66x1xf32, #tpu.memory_space<vmem>>, vector<66x1xf32>
    %15 = vector.broadcast %14 : vector<66x1xf32> to vector<66x32xf32>
    %16 = arith.mulf %11, %15 : vector<66x32xf32>
    %cst_13 = arith.constant dense<0.000000e+00> : vector<32xf32>
    %17 = vector.multi_reduction <add>, %16, %cst_13 [0] : vector<66x32xf32> to vector<32xf32>
    %18 = vector.shape_cast %17 : vector<32xf32> to vector<1x32xf32>
    %cst_14 = arith.constant 1.562500e-02 : f32
    %19 = vector.broadcast %cst_14 : f32 to vector<1x32xf32>
    %20 = arith.mulf %18, %19 : vector<1x32xf32>
    %21 = vector.broadcast %20 : vector<1x32xf32> to vector<66x32xf32>
    %22 = arith.subf %11, %21 : vector<66x32xf32>
    %23 = vector.broadcast %14 : vector<66x1xf32> to vector<66x32xf32>
    %24 = arith.mulf %22, %23 : vector<66x32xf32>
    %25 = arith.mulf %24, %24 : vector<66x32xf32>
    %cst_15 = arith.constant dense<0.000000e+00> : vector<32xf32>
    %26 = vector.multi_reduction <add>, %25, %cst_15 [0] : vector<66x32xf32> to vector<32xf32>
    %27 = vector.shape_cast %26 : vector<32xf32> to vector<1x32xf32>
    %cst_16 = arith.constant 1.562500e-02 : f32
    %28 = vector.broadcast %cst_16 : f32 to vector<1x32xf32>
    %29 = arith.mulf %27, %28 : vector<1x32xf32>
    %cst_17 = arith.constant 9.99999974E-6 : f32
    %30 = vector.broadcast %cst_17 : f32 to vector<1x32xf32>
    %31 = arith.addf %29, %30 : vector<1x32xf32>
    %32 = math.rsqrt %31 : vector<1x32xf32>
    %33 = arith.mulf %32, %12 : vector<1x32xf32>
    %34 = vector.broadcast %33 : vector<1x32xf32> to vector<66x32xf32>
    %35 = arith.mulf %22, %34 : vector<66x32xf32>
    %36 = vector.broadcast %13 : vector<1x32xf32> to vector<66x32xf32>
    %37 = arith.addf %35, %36 : vector<66x32xf32>
    %cst_18 = arith.constant 0.000000e+00 : f32
    %38 = vector.broadcast %cst_18 : f32 to vector<66x32xf32>
    %39 = arith.cmpf oge, %37, %38 : vector<66x32xf32>
    %cst_19 = arith.constant 2.000000e-01 : f32
    %40 = vector.broadcast %cst_19 : f32 to vector<66x32xf32>
    %41 = arith.mulf %40, %37 : vector<66x32xf32>
    %42 = arith.select %39, %37, %41 : vector<66x32xi1>, vector<66x32xf32>
    %43 = vector.extract_strided_slice %42 {offsets = [0, 0], sizes = [64, 32], strides = [1, 1]} : vector<66x32xf32> to vector<64x32xf32>
    %c0_20 = arith.constant 0 : index
    %c0_21 = arith.constant 0 : index
    %44 = vector.load %arg8[%c0_20, %c0_21] : memref<96x64xf32, #tpu.memory_space<vmem>>, vector<32x64xf32>
    %cst_22 = arith.constant dense<0.000000e+00> : vector<64x64xf32>
    %45 = tpu.matmul %43, %44, %cst_22 {dimension_numbers = #tpu.dot_dimension_numbers<[1], [0], [0], [1], [0, 0, 1, 1], [], []>} : vector<64x32xf32>, vector<32x64xf32>, vector<64x64xf32> -> vector<64x64xf32>
    %46 = vector.extract_strided_slice %42 {offsets = [1, 0], sizes = [64, 32], strides = [1, 1]} : vector<66x32xf32> to vector<64x32xf32>
    %c32_23 = arith.constant 32 : index
    %c0_24 = arith.constant 0 : index
    %47 = vector.load %arg8[%c32_23, %c0_24] : memref<96x64xf32, #tpu.memory_space<vmem>>, vector<32x64xf32>
    %cst_25 = arith.constant dense<0.000000e+00> : vector<64x64xf32>
    %48 = tpu.matmul %46, %47, %cst_25 {dimension_numbers = #tpu.dot_dimension_numbers<[1], [0], [0], [1], [0, 0, 1, 1], [], []>} : vector<64x32xf32>, vector<32x64xf32>, vector<64x64xf32> -> vector<64x64xf32>
    %49 = arith.addf %45, %48 : vector<64x64xf32>
    %50 = vector.extract_strided_slice %42 {offsets = [2, 0], sizes = [64, 32], strides = [1, 1]} : vector<66x32xf32> to vector<64x32xf32>
    %c64 = arith.constant 64 : index
    %c0_26 = arith.constant 0 : index
    %51 = vector.load %arg8[%c64, %c0_26] : memref<96x64xf32, #tpu.memory_space<vmem>>, vector<32x64xf32>
    %cst_27 = arith.constant dense<0.000000e+00> : vector<64x64xf32>
    %52 = tpu.matmul %50, %51, %cst_27 {dimension_numbers = #tpu.dot_dimension_numbers<[1], [0], [0], [1], [0, 0, 1, 1], [], []>} : vector<64x32xf32>, vector<32x64xf32>, vector<64x64xf32> -> vector<64x64xf32>
    %53 = arith.addf %49, %52 : vector<64x64xf32>
    %c0_28 = arith.constant 0 : index
    %c0_29 = arith.constant 0 : index
    %54 = vector.load %arg9[%c0_28, %c0_29] : memref<1x64xf32, #tpu.memory_space<vmem>>, vector<1x64xf32>
    %c0_30 = arith.constant 0 : index
    %c0_31 = arith.constant 0 : index
    %55 = vector.load %arg10[%c0_30, %c0_31] : memref<1x64xf32, #tpu.memory_space<vmem>>, vector<1x64xf32>
    %c0_32 = arith.constant 0 : index
    %c0_33 = arith.constant 0 : index
    %56 = vector.load %arg2[%c0_32, %c0_33] : memref<64x1xf32, #tpu.memory_space<vmem>>, vector<64x1xf32>
    %57 = vector.broadcast %56 : vector<64x1xf32> to vector<64x64xf32>
    %58 = arith.mulf %53, %57 : vector<64x64xf32>
    %cst_34 = arith.constant dense<0.000000e+00> : vector<64xf32>
    %59 = vector.multi_reduction <add>, %58, %cst_34 [0] : vector<64x64xf32> to vector<64xf32>
    %60 = vector.shape_cast %59 : vector<64xf32> to vector<1x64xf32>
    %cst_35 = arith.constant 0.0166666675 : f32
    %61 = vector.broadcast %cst_35 : f32 to vector<1x64xf32>
    %62 = arith.mulf %60, %61 : vector<1x64xf32>
    %63 = vector.broadcast %62 : vector<1x64xf32> to vector<64x64xf32>
    %64 = arith.subf %53, %63 : vector<64x64xf32>
    %65 = vector.broadcast %56 : vector<64x1xf32> to vector<64x64xf32>
    %66 = arith.mulf %64, %65 : vector<64x64xf32>
    %67 = arith.mulf %66, %66 : vector<64x64xf32>
    %cst_36 = arith.constant dense<0.000000e+00> : vector<64xf32>
    %68 = vector.multi_reduction <add>, %67, %cst_36 [0] : vector<64x64xf32> to vector<64xf32>
    %69 = vector.shape_cast %68 : vector<64xf32> to vector<1x64xf32>
    %cst_37 = arith.constant 0.0166666675 : f32
    %70 = vector.broadcast %cst_37 : f32 to vector<1x64xf32>
    %71 = arith.mulf %69, %70 : vector<1x64xf32>
    %cst_38 = arith.constant 9.99999974E-6 : f32
    %72 = vector.broadcast %cst_38 : f32 to vector<1x64xf32>
    %73 = arith.addf %71, %72 : vector<1x64xf32>
    %74 = math.rsqrt %73 : vector<1x64xf32>
    %75 = arith.mulf %74, %54 : vector<1x64xf32>
    %76 = vector.broadcast %75 : vector<1x64xf32> to vector<64x64xf32>
    %77 = arith.mulf %64, %76 : vector<64x64xf32>
    %78 = vector.broadcast %55 : vector<1x64xf32> to vector<64x64xf32>
    %79 = arith.addf %77, %78 : vector<64x64xf32>
    %cst_39 = arith.constant 0.000000e+00 : f32
    %80 = vector.broadcast %cst_39 : f32 to vector<64x64xf32>
    %81 = arith.cmpf oge, %79, %80 : vector<64x64xf32>
    %cst_40 = arith.constant 2.000000e-01 : f32
    %82 = vector.broadcast %cst_40 : f32 to vector<64x64xf32>
    %83 = arith.mulf %82, %79 : vector<64x64xf32>
    %84 = arith.select %81, %79, %83 : vector<64x64xi1>, vector<64x64xf32>
    %85 = vector.extract_strided_slice %84 {offsets = [0, 0], sizes = [61, 64], strides = [1, 1]} : vector<64x64xf32> to vector<61x64xf32>
    %c0_41 = arith.constant 0 : index
    %c0_42 = arith.constant 0 : index
    %86 = vector.load %arg11[%c0_41, %c0_42] : memref<256x64xf32, #tpu.memory_space<vmem>>, vector<64x64xf32>
    %cst_43 = arith.constant dense<0.000000e+00> : vector<61x64xf32>
    %87 = tpu.matmul %85, %86, %cst_43 {dimension_numbers = #tpu.dot_dimension_numbers<[1], [0], [0], [1], [0, 0, 1, 1], [], []>} : vector<61x64xf32>, vector<64x64xf32>, vector<61x64xf32> -> vector<61x64xf32>
    %88 = vector.extract_strided_slice %84 {offsets = [1, 0], sizes = [61, 64], strides = [1, 1]} : vector<64x64xf32> to vector<61x64xf32>
    %c64_44 = arith.constant 64 : index
    %c0_45 = arith.constant 0 : index
    %89 = vector.load %arg11[%c64_44, %c0_45] : memref<256x64xf32, #tpu.memory_space<vmem>>, vector<64x64xf32>
    %cst_46 = arith.constant dense<0.000000e+00> : vector<61x64xf32>
    %90 = tpu.matmul %88, %89, %cst_46 {dimension_numbers = #tpu.dot_dimension_numbers<[1], [0], [0], [1], [0, 0, 1, 1], [], []>} : vector<61x64xf32>, vector<64x64xf32>, vector<61x64xf32> -> vector<61x64xf32>
    %91 = arith.addf %87, %90 : vector<61x64xf32>
    %92 = vector.extract_strided_slice %84 {offsets = [2, 0], sizes = [61, 64], strides = [1, 1]} : vector<64x64xf32> to vector<61x64xf32>
    %c128 = arith.constant 128 : index
    %c0_47 = arith.constant 0 : index
    %93 = vector.load %arg11[%c128, %c0_47] : memref<256x64xf32, #tpu.memory_space<vmem>>, vector<64x64xf32>
    %cst_48 = arith.constant dense<0.000000e+00> : vector<61x64xf32>
    %94 = tpu.matmul %92, %93, %cst_48 {dimension_numbers = #tpu.dot_dimension_numbers<[1], [0], [0], [1], [0, 0, 1, 1], [], []>} : vector<61x64xf32>, vector<64x64xf32>, vector<61x64xf32> -> vector<61x64xf32>
    %95 = arith.addf %91, %94 : vector<61x64xf32>
    %96 = vector.extract_strided_slice %84 {offsets = [3, 0], sizes = [61, 64], strides = [1, 1]} : vector<64x64xf32> to vector<61x64xf32>
    %c192 = arith.constant 192 : index
    %c0_49 = arith.constant 0 : index
    %97 = vector.load %arg11[%c192, %c0_49] : memref<256x64xf32, #tpu.memory_space<vmem>>, vector<64x64xf32>
    %cst_50 = arith.constant dense<0.000000e+00> : vector<61x64xf32>
    %98 = tpu.matmul %96, %97, %cst_50 {dimension_numbers = #tpu.dot_dimension_numbers<[1], [0], [0], [1], [0, 0, 1, 1], [], []>} : vector<61x64xf32>, vector<64x64xf32>, vector<61x64xf32> -> vector<61x64xf32>
    %99 = arith.addf %95, %98 : vector<61x64xf32>
    %c0_51 = arith.constant 0 : index
    %c0_52 = arith.constant 0 : index
    %100 = vector.load %arg3[%c0_51, %c0_52] : memref<28x61xf32, #tpu.memory_space<vmem>>, vector<28x61xf32>
    %cst_53 = arith.constant dense<0.000000e+00> : vector<28x64xf32>
    %101 = tpu.matmul %100, %99, %cst_53 {dimension_numbers = #tpu.dot_dimension_numbers<[1], [0], [0], [1], [0, 0, 1, 1], [], []>} : vector<28x61xf32>, vector<61x64xf32>, vector<28x64xf32> -> vector<28x64xf32>
    %c0_54 = arith.constant 0 : index
    %c0_55 = arith.constant 0 : index
    %102 = vector.load %arg12[%c0_54, %c0_55] : memref<1x64xf32, #tpu.memory_space<vmem>>, vector<1x64xf32>
    %c0_56 = arith.constant 0 : index
    %c0_57 = arith.constant 0 : index
    %103 = vector.load %arg13[%c0_56, %c0_57] : memref<1x64xf32, #tpu.memory_space<vmem>>, vector<1x64xf32>
    %cst_58 = arith.constant dense<0.000000e+00> : vector<64xf32>
    %104 = vector.multi_reduction <add>, %101, %cst_58 [0] : vector<28x64xf32> to vector<64xf32>
    %105 = vector.shape_cast %104 : vector<64xf32> to vector<1x64xf32>
    %cst_59 = arith.constant 0.0357142873 : f32
    %106 = vector.broadcast %cst_59 : f32 to vector<1x64xf32>
    %107 = arith.mulf %105, %106 : vector<1x64xf32>
    %108 = vector.broadcast %107 : vector<1x64xf32> to vector<28x64xf32>
    %109 = arith.subf %101, %108 : vector<28x64xf32>
    %110 = arith.mulf %109, %109 : vector<28x64xf32>
    %cst_60 = arith.constant dense<0.000000e+00> : vector<64xf32>
    %111 = vector.multi_reduction <add>, %110, %cst_60 [0] : vector<28x64xf32> to vector<64xf32>
    %112 = vector.shape_cast %111 : vector<64xf32> to vector<1x64xf32>
    %cst_61 = arith.constant 0.0357142873 : f32
    %113 = vector.broadcast %cst_61 : f32 to vector<1x64xf32>
    %114 = arith.mulf %112, %113 : vector<1x64xf32>
    %cst_62 = arith.constant 9.99999974E-6 : f32
    %115 = vector.broadcast %cst_62 : f32 to vector<1x64xf32>
    %116 = arith.addf %114, %115 : vector<1x64xf32>
    %117 = math.rsqrt %116 : vector<1x64xf32>
    %118 = arith.mulf %117, %102 : vector<1x64xf32>
    %119 = vector.broadcast %118 : vector<1x64xf32> to vector<28x64xf32>
    %120 = arith.mulf %109, %119 : vector<28x64xf32>
    %121 = vector.broadcast %103 : vector<1x64xf32> to vector<28x64xf32>
    %122 = arith.addf %120, %121 : vector<28x64xf32>
    %cst_63 = arith.constant 0.000000e+00 : f32
    %123 = vector.broadcast %cst_63 : f32 to vector<28x64xf32>
    %124 = arith.cmpf oge, %122, %123 : vector<28x64xf32>
    %cst_64 = arith.constant 2.000000e-01 : f32
    %125 = vector.broadcast %cst_64 : f32 to vector<28x64xf32>
    %126 = arith.mulf %125, %122 : vector<28x64xf32>
    %127 = arith.select %124, %122, %126 : vector<28x64xi1>, vector<28x64xf32>
    %128 = vector.extract_strided_slice %127 {offsets = [0, 0], sizes = [26, 64], strides = [1, 1]} : vector<28x64xf32> to vector<26x64xf32>
    %c0_65 = arith.constant 0 : index
    %c0_66 = arith.constant 0 : index
    %129 = vector.load %arg14[%c0_65, %c0_66] : memref<192x32xf32, #tpu.memory_space<vmem>>, vector<64x32xf32>
    %cst_67 = arith.constant dense<0.000000e+00> : vector<26x32xf32>
    %130 = tpu.matmul %128, %129, %cst_67 {dimension_numbers = #tpu.dot_dimension_numbers<[1], [0], [0], [1], [0, 0, 1, 1], [], []>} : vector<26x64xf32>, vector<64x32xf32>, vector<26x32xf32> -> vector<26x32xf32>
    %131 = vector.extract_strided_slice %127 {offsets = [1, 0], sizes = [26, 64], strides = [1, 1]} : vector<28x64xf32> to vector<26x64xf32>
    %c64_68 = arith.constant 64 : index
    %c0_69 = arith.constant 0 : index
    %132 = vector.load %arg14[%c64_68, %c0_69] : memref<192x32xf32, #tpu.memory_space<vmem>>, vector<64x32xf32>
    %cst_70 = arith.constant dense<0.000000e+00> : vector<26x32xf32>
    %133 = tpu.matmul %131, %132, %cst_70 {dimension_numbers = #tpu.dot_dimension_numbers<[1], [0], [0], [1], [0, 0, 1, 1], [], []>} : vector<26x64xf32>, vector<64x32xf32>, vector<26x32xf32> -> vector<26x32xf32>
    %134 = arith.addf %130, %133 : vector<26x32xf32>
    %135 = vector.extract_strided_slice %127 {offsets = [2, 0], sizes = [26, 64], strides = [1, 1]} : vector<28x64xf32> to vector<26x64xf32>
    %c128_71 = arith.constant 128 : index
    %c0_72 = arith.constant 0 : index
    %136 = vector.load %arg14[%c128_71, %c0_72] : memref<192x32xf32, #tpu.memory_space<vmem>>, vector<64x32xf32>
    %cst_73 = arith.constant dense<0.000000e+00> : vector<26x32xf32>
    %137 = tpu.matmul %135, %136, %cst_73 {dimension_numbers = #tpu.dot_dimension_numbers<[1], [0], [0], [1], [0, 0, 1, 1], [], []>} : vector<26x64xf32>, vector<64x32xf32>, vector<26x32xf32> -> vector<26x32xf32>
    %138 = arith.addf %134, %137 : vector<26x32xf32>
    %c0_74 = arith.constant 0 : index
    %c0_75 = arith.constant 0 : index
    %139 = vector.load %arg15[%c0_74, %c0_75] : memref<1x32xf32, #tpu.memory_space<vmem>>, vector<1x32xf32>
    %140 = vector.broadcast %139 : vector<1x32xf32> to vector<26x32xf32>
    %141 = arith.addf %138, %140 : vector<26x32xf32>
    %142 = vector.extract_strided_slice %141 {offsets = [0, 0], sizes = [15, 32], strides = [1, 1]} : vector<26x32xf32> to vector<15x32xf32>
    %c0_76 = arith.constant 0 : index
    %c0_77 = arith.constant 0 : index
    %143 = vector.load %arg16[%c0_76, %c0_77] : memref<384x128xf32, #tpu.memory_space<vmem>>, vector<32x128xf32>
    %cst_78 = arith.constant dense<0.000000e+00> : vector<15x128xf32>
    %144 = tpu.matmul %142, %143, %cst_78 {dimension_numbers = #tpu.dot_dimension_numbers<[1], [0], [0], [1], [0, 0, 1, 1], [], []>} : vector<15x32xf32>, vector<32x128xf32>, vector<15x128xf32> -> vector<15x128xf32>
    %145 = vector.extract_strided_slice %141 {offsets = [1, 0], sizes = [15, 32], strides = [1, 1]} : vector<26x32xf32> to vector<15x32xf32>
    %c32_79 = arith.constant 32 : index
    %c0_80 = arith.constant 0 : index
    %146 = vector.load %arg16[%c32_79, %c0_80] : memref<384x128xf32, #tpu.memory_space<vmem>>, vector<32x128xf32>
    %cst_81 = arith.constant dense<0.000000e+00> : vector<15x128xf32>
    %147 = tpu.matmul %145, %146, %cst_81 {dimension_numbers = #tpu.dot_dimension_numbers<[1], [0], [0], [1], [0, 0, 1, 1], [], []>} : vector<15x32xf32>, vector<32x128xf32>, vector<15x128xf32> -> vector<15x128xf32>
    %148 = arith.addf %144, %147 : vector<15x128xf32>
    %149 = vector.extract_strided_slice %141 {offsets = [2, 0], sizes = [15, 32], strides = [1, 1]} : vector<26x32xf32> to vector<15x32xf32>
    %c64_82 = arith.constant 64 : index
    %c0_83 = arith.constant 0 : index
    %150 = vector.load %arg16[%c64_82, %c0_83] : memref<384x128xf32, #tpu.memory_space<vmem>>, vector<32x128xf32>
    %cst_84 = arith.constant dense<0.000000e+00> : vector<15x128xf32>
    %151 = tpu.matmul %149, %150, %cst_84 {dimension_numbers = #tpu.dot_dimension_numbers<[1], [0], [0], [1], [0, 0, 1, 1], [], []>} : vector<15x32xf32>, vector<32x128xf32>, vector<15x128xf32> -> vector<15x128xf32>
    %152 = arith.addf %148, %151 : vector<15x128xf32>
    %153 = vector.extract_strided_slice %141 {offsets = [3, 0], sizes = [15, 32], strides = [1, 1]} : vector<26x32xf32> to vector<15x32xf32>
    %c96 = arith.constant 96 : index
    %c0_85 = arith.constant 0 : index
    %154 = vector.load %arg16[%c96, %c0_85] : memref<384x128xf32, #tpu.memory_space<vmem>>, vector<32x128xf32>
    %cst_86 = arith.constant dense<0.000000e+00> : vector<15x128xf32>
    %155 = tpu.matmul %153, %154, %cst_86 {dimension_numbers = #tpu.dot_dimension_numbers<[1], [0], [0], [1], [0, 0, 1, 1], [], []>} : vector<15x32xf32>, vector<32x128xf32>, vector<15x128xf32> -> vector<15x128xf32>
    %156 = arith.addf %152, %155 : vector<15x128xf32>
    %157 = vector.extract_strided_slice %141 {offsets = [4, 0], sizes = [15, 32], strides = [1, 1]} : vector<26x32xf32> to vector<15x32xf32>
    %c128_87 = arith.constant 128 : index
    %c0_88 = arith.constant 0 : index
    %158 = vector.load %arg16[%c128_87, %c0_88] : memref<384x128xf32, #tpu.memory_space<vmem>>, vector<32x128xf32>
    %cst_89 = arith.constant dense<0.000000e+00> : vector<15x128xf32>
    %159 = tpu.matmul %157, %158, %cst_89 {dimension_numbers = #tpu.dot_dimension_numbers<[1], [0], [0], [1], [0, 0, 1, 1], [], []>} : vector<15x32xf32>, vector<32x128xf32>, vector<15x128xf32> -> vector<15x128xf32>
    %160 = arith.addf %156, %159 : vector<15x128xf32>
    %161 = vector.extract_strided_slice %141 {offsets = [5, 0], sizes = [15, 32], strides = [1, 1]} : vector<26x32xf32> to vector<15x32xf32>
    %c160 = arith.constant 160 : index
    %c0_90 = arith.constant 0 : index
    %162 = vector.load %arg16[%c160, %c0_90] : memref<384x128xf32, #tpu.memory_space<vmem>>, vector<32x128xf32>
    %cst_91 = arith.constant dense<0.000000e+00> : vector<15x128xf32>
    %163 = tpu.matmul %161, %162, %cst_91 {dimension_numbers = #tpu.dot_dimension_numbers<[1], [0], [0], [1], [0, 0, 1, 1], [], []>} : vector<15x32xf32>, vector<32x128xf32>, vector<15x128xf32> -> vector<15x128xf32>
    %164 = arith.addf %160, %163 : vector<15x128xf32>
    %165 = vector.extract_strided_slice %141 {offsets = [6, 0], sizes = [15, 32], strides = [1, 1]} : vector<26x32xf32> to vector<15x32xf32>
    %c192_92 = arith.constant 192 : index
    %c0_93 = arith.constant 0 : index
    %166 = vector.load %arg16[%c192_92, %c0_93] : memref<384x128xf32, #tpu.memory_space<vmem>>, vector<32x128xf32>
    %cst_94 = arith.constant dense<0.000000e+00> : vector<15x128xf32>
    %167 = tpu.matmul %165, %166, %cst_94 {dimension_numbers = #tpu.dot_dimension_numbers<[1], [0], [0], [1], [0, 0, 1, 1], [], []>} : vector<15x32xf32>, vector<32x128xf32>, vector<15x128xf32> -> vector<15x128xf32>
    %168 = arith.addf %164, %167 : vector<15x128xf32>
    %169 = vector.extract_strided_slice %141 {offsets = [7, 0], sizes = [15, 32], strides = [1, 1]} : vector<26x32xf32> to vector<15x32xf32>
    %c224 = arith.constant 224 : index
    %c0_95 = arith.constant 0 : index
    %170 = vector.load %arg16[%c224, %c0_95] : memref<384x128xf32, #tpu.memory_space<vmem>>, vector<32x128xf32>
    %cst_96 = arith.constant dense<0.000000e+00> : vector<15x128xf32>
    %171 = tpu.matmul %169, %170, %cst_96 {dimension_numbers = #tpu.dot_dimension_numbers<[1], [0], [0], [1], [0, 0, 1, 1], [], []>} : vector<15x32xf32>, vector<32x128xf32>, vector<15x128xf32> -> vector<15x128xf32>
    %172 = arith.addf %168, %171 : vector<15x128xf32>
    %173 = vector.extract_strided_slice %141 {offsets = [8, 0], sizes = [15, 32], strides = [1, 1]} : vector<26x32xf32> to vector<15x32xf32>
    %c256 = arith.constant 256 : index
    %c0_97 = arith.constant 0 : index
    %174 = vector.load %arg16[%c256, %c0_97] : memref<384x128xf32, #tpu.memory_space<vmem>>, vector<32x128xf32>
    %cst_98 = arith.constant dense<0.000000e+00> : vector<15x128xf32>
    %175 = tpu.matmul %173, %174, %cst_98 {dimension_numbers = #tpu.dot_dimension_numbers<[1], [0], [0], [1], [0, 0, 1, 1], [], []>} : vector<15x32xf32>, vector<32x128xf32>, vector<15x128xf32> -> vector<15x128xf32>
    %176 = arith.addf %172, %175 : vector<15x128xf32>
    %177 = vector.extract_strided_slice %141 {offsets = [9, 0], sizes = [15, 32], strides = [1, 1]} : vector<26x32xf32> to vector<15x32xf32>
    %c288 = arith.constant 288 : index
    %c0_99 = arith.constant 0 : index
    %178 = vector.load %arg16[%c288, %c0_99] : memref<384x128xf32, #tpu.memory_space<vmem>>, vector<32x128xf32>
    %cst_100 = arith.constant dense<0.000000e+00> : vector<15x128xf32>
    %179 = tpu.matmul %177, %178, %cst_100 {dimension_numbers = #tpu.dot_dimension_numbers<[1], [0], [0], [1], [0, 0, 1, 1], [], []>} : vector<15x32xf32>, vector<32x128xf32>, vector<15x128xf32> -> vector<15x128xf32>
    %180 = arith.addf %176, %179 : vector<15x128xf32>
    %181 = vector.extract_strided_slice %141 {offsets = [10, 0], sizes = [15, 32], strides = [1, 1]} : vector<26x32xf32> to vector<15x32xf32>
    %c320 = arith.constant 320 : index
    %c0_101 = arith.constant 0 : index
    %182 = vector.load %arg16[%c320, %c0_101] : memref<384x128xf32, #tpu.memory_space<vmem>>, vector<32x128xf32>
    %cst_102 = arith.constant dense<0.000000e+00> : vector<15x128xf32>
    %183 = tpu.matmul %181, %182, %cst_102 {dimension_numbers = #tpu.dot_dimension_numbers<[1], [0], [0], [1], [0, 0, 1, 1], [], []>} : vector<15x32xf32>, vector<32x128xf32>, vector<15x128xf32> -> vector<15x128xf32>
    %184 = arith.addf %180, %183 : vector<15x128xf32>
    %185 = vector.extract_strided_slice %141 {offsets = [11, 0], sizes = [15, 32], strides = [1, 1]} : vector<26x32xf32> to vector<15x32xf32>
    %c352 = arith.constant 352 : index
    %c0_103 = arith.constant 0 : index
    %186 = vector.load %arg16[%c352, %c0_103] : memref<384x128xf32, #tpu.memory_space<vmem>>, vector<32x128xf32>
    %cst_104 = arith.constant dense<0.000000e+00> : vector<15x128xf32>
    %187 = tpu.matmul %185, %186, %cst_104 {dimension_numbers = #tpu.dot_dimension_numbers<[1], [0], [0], [1], [0, 0, 1, 1], [], []>} : vector<15x32xf32>, vector<32x128xf32>, vector<15x128xf32> -> vector<15x128xf32>
    %188 = arith.addf %184, %187 : vector<15x128xf32>
    %c0_105 = arith.constant 0 : index
    %c0_106 = arith.constant 0 : index
    %189 = vector.load %arg4[%c0_105, %c0_106] : memref<2x15xf32, #tpu.memory_space<vmem>>, vector<2x15xf32>
    %cst_107 = arith.constant dense<0.000000e+00> : vector<2x128xf32>
    %190 = tpu.matmul %189, %188, %cst_107 {dimension_numbers = #tpu.dot_dimension_numbers<[1], [0], [0], [1], [0, 0, 1, 1], [], []>} : vector<2x15xf32>, vector<15x128xf32>, vector<2x128xf32> -> vector<2x128xf32>
    %c0_108 = arith.constant 0 : index
    %c0_109 = arith.constant 0 : index
    %191 = vector.load %arg17[%c0_108, %c0_109] : memref<1x128xf32, #tpu.memory_space<vmem>>, vector<1x128xf32>
    %192 = vector.broadcast %191 : vector<1x128xf32> to vector<2x128xf32>
    %193 = arith.addf %190, %192 : vector<2x128xf32>
    %c0_110 = arith.constant 0 : index
    %c0_111 = arith.constant 0 : index
    %194 = vector.load %arg18[%c0_110, %c0_111] : memref<1x128xf32, #tpu.memory_space<vmem>>, vector<1x128xf32>
    %c0_112 = arith.constant 0 : index
    %c0_113 = arith.constant 0 : index
    %195 = vector.load %arg19[%c0_112, %c0_113] : memref<1x128xf32, #tpu.memory_space<vmem>>, vector<1x128xf32>
    %cst_114 = arith.constant dense<0.000000e+00> : vector<128xf32>
    %196 = vector.multi_reduction <add>, %193, %cst_114 [0] : vector<2x128xf32> to vector<128xf32>
    %197 = vector.shape_cast %196 : vector<128xf32> to vector<1x128xf32>
    %cst_115 = arith.constant 5.000000e-01 : f32
    %198 = vector.broadcast %cst_115 : f32 to vector<1x128xf32>
    %199 = arith.mulf %197, %198 : vector<1x128xf32>
    %200 = vector.broadcast %199 : vector<1x128xf32> to vector<2x128xf32>
    %201 = arith.subf %193, %200 : vector<2x128xf32>
    %202 = arith.mulf %201, %201 : vector<2x128xf32>
    %cst_116 = arith.constant dense<0.000000e+00> : vector<128xf32>
    %203 = vector.multi_reduction <add>, %202, %cst_116 [0] : vector<2x128xf32> to vector<128xf32>
    %204 = vector.shape_cast %203 : vector<128xf32> to vector<1x128xf32>
    %cst_117 = arith.constant 5.000000e-01 : f32
    %205 = vector.broadcast %cst_117 : f32 to vector<1x128xf32>
    %206 = arith.mulf %204, %205 : vector<1x128xf32>
    %cst_118 = arith.constant 9.99999974E-6 : f32
    %207 = vector.broadcast %cst_118 : f32 to vector<1x128xf32>
    %208 = arith.addf %206, %207 : vector<1x128xf32>
    %209 = math.rsqrt %208 : vector<1x128xf32>
    %210 = arith.mulf %209, %194 : vector<1x128xf32>
    %211 = vector.broadcast %210 : vector<1x128xf32> to vector<2x128xf32>
    %212 = arith.mulf %201, %211 : vector<2x128xf32>
    %213 = vector.broadcast %195 : vector<1x128xf32> to vector<2x128xf32>
    %214 = arith.addf %212, %213 : vector<2x128xf32>
    %c0_119 = arith.constant 0 : index
    %c0_120 = arith.constant 0 : index
    %215 = vector.load %arg20[%c0_119, %c0_120] : memref<128x64xf32, #tpu.memory_space<vmem>>, vector<128x64xf32>
    %cst_121 = arith.constant dense<0.000000e+00> : vector<2x64xf32>
    %216 = tpu.matmul %214, %215, %cst_121 {dimension_numbers = #tpu.dot_dimension_numbers<[1], [0], [0], [1], [0, 0, 1, 1], [], []>} : vector<2x128xf32>, vector<128x64xf32>, vector<2x64xf32> -> vector<2x64xf32>
    %c0_122 = arith.constant 0 : index
    %c0_123 = arith.constant 0 : index
    %217 = vector.load %arg21[%c0_122, %c0_123] : memref<1x64xf32, #tpu.memory_space<vmem>>, vector<1x64xf32>
    %218 = vector.broadcast %217 : vector<1x64xf32> to vector<2x64xf32>
    %219 = arith.addf %216, %218 : vector<2x64xf32>
    %c0_124 = arith.constant 0 : index
    %c0_125 = arith.constant 0 : index
    %220 = vector.load %arg22[%c0_124, %c0_125] : memref<1x64xf32, #tpu.memory_space<vmem>>, vector<1x64xf32>
    %c0_126 = arith.constant 0 : index
    %c0_127 = arith.constant 0 : index
    %221 = vector.load %arg23[%c0_126, %c0_127] : memref<1x64xf32, #tpu.memory_space<vmem>>, vector<1x64xf32>
    %cst_128 = arith.constant dense<0.000000e+00> : vector<64xf32>
    %222 = vector.multi_reduction <add>, %219, %cst_128 [0] : vector<2x64xf32> to vector<64xf32>
    %223 = vector.shape_cast %222 : vector<64xf32> to vector<1x64xf32>
    %cst_129 = arith.constant 5.000000e-01 : f32
    %224 = vector.broadcast %cst_129 : f32 to vector<1x64xf32>
    %225 = arith.mulf %223, %224 : vector<1x64xf32>
    %226 = vector.broadcast %225 : vector<1x64xf32> to vector<2x64xf32>
    %227 = arith.subf %219, %226 : vector<2x64xf32>
    %228 = arith.mulf %227, %227 : vector<2x64xf32>
    %cst_130 = arith.constant dense<0.000000e+00> : vector<64xf32>
    %229 = vector.multi_reduction <add>, %228, %cst_130 [0] : vector<2x64xf32> to vector<64xf32>
    %230 = vector.shape_cast %229 : vector<64xf32> to vector<1x64xf32>
    %cst_131 = arith.constant 5.000000e-01 : f32
    %231 = vector.broadcast %cst_131 : f32 to vector<1x64xf32>
    %232 = arith.mulf %230, %231 : vector<1x64xf32>
    %cst_132 = arith.constant 9.99999974E-6 : f32
    %233 = vector.broadcast %cst_132 : f32 to vector<1x64xf32>
    %234 = arith.addf %232, %233 : vector<1x64xf32>
    %235 = math.rsqrt %234 : vector<1x64xf32>
    %236 = arith.mulf %235, %220 : vector<1x64xf32>
    %237 = vector.broadcast %236 : vector<1x64xf32> to vector<2x64xf32>
    %238 = arith.mulf %227, %237 : vector<2x64xf32>
    %239 = vector.broadcast %221 : vector<1x64xf32> to vector<2x64xf32>
    %240 = arith.addf %238, %239 : vector<2x64xf32>
    %c0_133 = arith.constant 0 : index
    %c0_134 = arith.constant 0 : index
    %241 = vector.load %arg24[%c0_133, %c0_134] : memref<64x32xf32, #tpu.memory_space<vmem>>, vector<64x32xf32>
    %cst_135 = arith.constant dense<0.000000e+00> : vector<2x32xf32>
    %242 = tpu.matmul %240, %241, %cst_135 {dimension_numbers = #tpu.dot_dimension_numbers<[1], [0], [0], [1], [0, 0, 1, 1], [], []>} : vector<2x64xf32>, vector<64x32xf32>, vector<2x32xf32> -> vector<2x32xf32>
    %c0_136 = arith.constant 0 : index
    %c0_137 = arith.constant 0 : index
    %243 = vector.load %arg25[%c0_136, %c0_137] : memref<1x32xf32, #tpu.memory_space<vmem>>, vector<1x32xf32>
    %244 = vector.broadcast %243 : vector<1x32xf32> to vector<2x32xf32>
    %245 = arith.addf %242, %244 : vector<2x32xf32>
    %c0_138 = arith.constant 0 : index
    %c0_139 = arith.constant 0 : index
    %246 = vector.load %arg26[%c0_138, %c0_139] : memref<32x64xf32, #tpu.memory_space<vmem>>, vector<32x64xf32>
    %cst_140 = arith.constant dense<0.000000e+00> : vector<2x64xf32>
    %247 = tpu.matmul %245, %246, %cst_140 {dimension_numbers = #tpu.dot_dimension_numbers<[1], [0], [0], [1], [0, 0, 1, 1], [], []>} : vector<2x32xf32>, vector<32x64xf32>, vector<2x64xf32> -> vector<2x64xf32>
    %c0_141 = arith.constant 0 : index
    %c0_142 = arith.constant 0 : index
    %248 = vector.load %arg27[%c0_141, %c0_142] : memref<1x64xf32, #tpu.memory_space<vmem>>, vector<1x64xf32>
    %249 = vector.broadcast %248 : vector<1x64xf32> to vector<2x64xf32>
    %250 = arith.addf %247, %249 : vector<2x64xf32>
    %c0_143 = arith.constant 0 : index
    %c0_144 = arith.constant 0 : index
    %251 = vector.load %arg28[%c0_143, %c0_144] : memref<2x64xf32, #tpu.memory_space<vmem>>, vector<2x64xf32>
    tpu.vector_store %arg28[%c0_143, %c0_144], %250 {strides = array<i32>} : memref<2x64xf32, #tpu.memory_space<vmem>>, vector<2x64xf32>,
    return
  }
}

</mosaic_0001>

<llo_original>
// kernel: pose_encoder_conv_forward.1
$region0: #{pose_encoder_conv_forward.1}
  #allocation0 [shape = 'u32[]', space=smem, size = 0x4, offset = 0x4, fixed_abs, tag = 'smem constant byte address 0x4 - core index']
  #allocation1 [shape = 'u32[72,128]{1,0:T(1,128)}', space=vmem, size = 0x9000, scoped, tag = 'internal scratch']
  %s0 = inlined_call_operand.vmem [shape: f32[68,16], index: 0, kind: input, shape index: {}]
  %s1 = inlined_call_operand.vmem [shape: f32[66,1], index: 1, kind: input, shape index: {}]
  %s2 = inlined_call_operand.vmem [shape: f32[64,1], index: 2, kind: input, shape index: {}]
  %s3 = inlined_call_operand.vmem [shape: f32[28,61], index: 3, kind: input, shape index: {}]
  %s4 = inlined_call_operand.vmem [shape: f32[2,15], index: 4, kind: input, shape index: {}]
  %s5 = inlined_call_operand.vmem [shape: f32[48,32], index: 5, kind: input, shape index: {}]
  %s6 = inlined_call_operand.vmem [shape: f32[1,32], index: 6, kind: input, shape index: {}]
  %s7 = inlined_call_operand.vmem [shape: f32[1,32], index: 7, kind: input, shape index: {}]
  %s8 = inlined_call_operand.vmem [shape: f32[96,64], index: 8, kind: input, shape index: {}]
  %s9 = inlined_call_operand.vmem [shape: f32[1,64], index: 9, kind: input, shape index: {}]
  %s10 = inlined_call_operand.vmem [shape: f32[1,64], index: 10, kind: input, shape index: {}]
  %s11 = inlined_call_operand.vmem [shape: f32[256,64], index: 11, kind: input, shape index: {}]
  %s12 = inlined_call_operand.vmem [shape: f32[1,64], index: 12, kind: input, shape index: {}]
  %s13 = inlined_call_operand.vmem [shape: f32[1,64], index: 13, kind: input, shape index: {}]
  %s14 = inlined_call_operand.vmem [shape: f32[192,32], index: 14, kind: input, shape index: {}]
  %s15 = inlined_call_operand.vmem [shape: f32[1,32], index: 15, kind: input, shape index: {}]
  %s16 = inlined_call_operand.vmem [shape: f32[384,128], index: 16, kind: input, shape index: {}]
  %s17 = inlined_call_operand.vmem [shape: f32[1,128], index: 17, kind: input, shape index: {}]
  %s18 = inlined_call_operand.vmem [shape: f32[1,128], index: 18, kind: input, shape index: {}]
  %s19 = inlined_call_operand.vmem [shape: f32[1,128], index: 19, kind: input, shape index: {}]
  %s20 = inlined_call_operand.vmem [shape: f32[128,64], index: 20, kind: input, shape index: {}]
  %s21 = inlined_call_operand.vmem [shape: f32[1,64], index: 21, kind: input, shape index: {}]
  %s22 = inlined_call_operand.vmem [shape: f32[1,64], index: 22, kind: input, shape index: {}]
  %s23 = inlined_call_operand.vmem [shape: f32[1,64], index: 23, kind: input, shape index: {}]
  %s24 = inlined_call_operand.vmem [shape: f32[64,32], index: 24, kind: input, shape index: {}]
  %s25 = inlined_call_operand.vmem [shape: f32[1,32], index: 25, kind: input, shape index: {}]
  %s26 = inlined_call_operand.vmem [shape: f32[32,64], index: 26, kind: input, shape index: {}]
  %s27 = inlined_call_operand.vmem [shape: f32[1,64], index: 27, kind: input, shape index: {}]
  %s28 = inlined_call_operand.vmem [shape: f32[2,64], index: 28, kind: output, shape index: {}]
  %s29 = sld [smem:[#allocation0]]
  $region122: #{pose_encoder_conv_forward.1} parent=0
    _
  %s31 = ssub.s32 1, %s29
  %s32 = scalar_select 0, %s31, %s29
  // Predicated region
  $region2: #{pose_encoder_conv_forward.1} parent=0 // pred_check
    _
  $region3: #{pose_encoder_conv_forward.1} parent=0 // pred_check_branch
    %34 = sbr.rel (0) target = $region5
  $region4: #{pose_encoder_conv_forward.1} parent=0 // pred_region
    _
  $region5: #{pose_encoder_conv_forward.1} parent=0 // pred_fallthru
    _
  // Predicated region
  $region6: #{pose_encoder_conv_forward.1} parent=0 // pred_check
    _
  $region7: #{pose_encoder_conv_forward.1} parent=0 // pred_check_branch
    %36 = sbr.rel (0) target = $region9
  $region8: #{pose_encoder_conv_forward.1} parent=0 // pred_region
    _
  $region9: #{pose_encoder_conv_forward.1} parent=0 // pred_fallthru
    _
  // Predicated region
  $region10: #{pose_encoder_conv_forward.1} parent=0 // pred_check
    _
  $region11: #{pose_encoder_conv_forward.1} parent=0 // pred_check_branch
    %38 = sbr.rel (0) target = $region13
  $region12: #{pose_encoder_conv_forward.1} parent=0 // pred_region
    _
  $region13: #{pose_encoder_conv_forward.1} parent=0 // pred_fallthru
    _
  // Predicated region
  $region14: #{pose_encoder_conv_forward.1} parent=0 // pred_check
    _
  $region15: #{pose_encoder_conv_forward.1} parent=0 // pred_check_branch
    %40 = sbr.rel (0) target = $region17
  $region16: #{pose_encoder_conv_forward.1} parent=0 // pred_region
    _
  $region17: #{pose_encoder_conv_forward.1} parent=0 // pred_fallthru
    _
  // Predicated region
  $region18: #{pose_encoder_conv_forward.1} parent=0 // pred_check
    _
  $region19: #{pose_encoder_conv_forward.1} parent=0 // pred_check_branch
    %42 = sbr.rel (0) target = $region21
  $region20: #{pose_encoder_conv_forward.1} parent=0 // pred_region
    _
  $region21: #{pose_encoder_conv_forward.1} parent=0 // pred_fallthru
    _
  // Predicated region
  $region22: #{pose_encoder_conv_forward.1} parent=0 // pred_check
    _
  $region23: #{pose_encoder_conv_forward.1} parent=0 // pred_check_branch
    %44 = sbr.rel (0) target = $region25
  $region24: #{pose_encoder_conv_forward.1} parent=0 // pred_region
    _
  $region25: #{pose_encoder_conv_forward.1} parent=0 // pred_fallthru
    _
  // Predicated region
  $region26: #{pose_encoder_conv_forward.1} parent=0 // pred_check
    _
  $region27: #{pose_encoder_conv_forward.1} parent=0 // pred_check_branch
    %46 = sbr.rel (0) target = $region29
  $region28: #{pose_encoder_conv_forward.1} parent=0 // pred_region
    _
  $region29: #{pose_encoder_conv_forward.1} parent=0 // pred_fallthru
    _
  // Predicated region
  $region30: #{pose_encoder_conv_forward.1} parent=0 // pred_check
    _
  $region31: #{pose_encoder_conv_forward.1} parent=0 // pred_check_branch
    %48 = sbr.rel (0) target = $region33
  $region32: #{pose_encoder_conv_forward.1} parent=0 // pred_region
    _
  $region33: #{pose_encoder_conv_forward.1} parent=0 // pred_fallthru
    _
  // Predicated region
  $region34: #{pose_encoder_conv_forward.1} parent=0 // pred_check
    _
  $region35: #{pose_encoder_conv_forward.1} parent=0 // pred_check_branch
    %50 = sbr.rel (0) target = $region37
  $region36: #{pose_encoder_conv_forward.1} parent=0 // pred_region
    _
  $region37: #{pose_encoder_conv_forward.1} parent=0 // pred_fallthru
    _
  // Predicated region
  $region38: #{pose_encoder_conv_forward.1} parent=0 // pred_check
    _
  $region39: #{pose_encoder_conv_forward.1} parent=0 // pred_check_branch
    %52 = sbr.rel (0) target = $region41
  $region40: #{pose_encoder_conv_forward.1} parent=0 // pred_region
    _
  $region41: #{pose_encoder_conv_forward.1} parent=0 // pred_fallthru
    _
  // Predicated region
  $region42: #{pose_encoder_conv_forward.1} parent=0 // pred_check
    _
  $region43: #{pose_encoder_conv_forward.1} parent=0 // pred_check_branch
    %54 = sbr.rel (0) target = $region45
  $region44: #{pose_encoder_conv_forward.1} parent=0 // pred_region
    _
  $region45: #{pose_encoder_conv_forward.1} parent=0 // pred_fallthru
    _
  // Predicated region
  $region46: #{pose_encoder_conv_forward.1} parent=0 // pred_check
    _
  $region47: #{pose_encoder_conv_forward.1} parent=0 // pred_check_branch
    %56 = sbr.rel (0) target = $region49
  $region48: #{pose_encoder_conv_forward.1} parent=0 // pred_region
    _
  $region49: #{pose_encoder_conv_forward.1} parent=0 // pred_fallthru
    _
  // Predicated region
  $region50: #{pose_encoder_conv_forward.1} parent=0 // pred_check
    _
  $region51: #{pose_encoder_conv_forward.1} parent=0 // pred_check_branch
    %58 = sbr.rel (0) target = $region53
  $region52: #{pose_encoder_conv_forward.1} parent=0 // pred_region
    _
  $region53: #{pose_encoder_conv_forward.1} parent=0 // pred_fallthru
    _
  // Predicated region
  $region54: #{pose_encoder_conv_forward.1} parent=0 // pred_check
    _
  $region55: #{pose_encoder_conv_forward.1} parent=0 // pred_check_branch
    %60 = sbr.rel (0) target = $region57
  $region56: #{pose_encoder_conv_forward.1} parent=0 // pred_region
    _
  $region57: #{pose_encoder_conv_forward.1} parent=0 // pred_fallthru
    _
  // Predicated region
  $region58: #{pose_encoder_conv_forward.1} parent=0 // pred_check
    _
  $region59: #{pose_encoder_conv_forward.1} parent=0 // pred_check_branch
    %62 = sbr.rel (0) target = $region61
  $region60: #{pose_encoder_conv_forward.1} parent=0 // pred_region
    _
  $region61: #{pose_encoder_conv_forward.1} parent=0 // pred_fallthru
    _
  // Predicated region
  $region62: #{pose_encoder_conv_forward.1} parent=0 // pred_check
    _
  $region63: #{pose_encoder_conv_forward.1} parent=0 // pred_check_branch
    %64 = sbr.rel (0) target = $region65
  $region64: #{pose_encoder_conv_forward.1} parent=0 // pred_region
    _
  $region65: #{pose_encoder_conv_forward.1} parent=0 // pred_fallthru
    _
  // Predicated region
  $region66: #{pose_encoder_conv_forward.1} parent=0 // pred_check
    _
  $region67: #{pose_encoder_conv_forward.1} parent=0 // pred_check_branch
    %66 = sbr.rel (0) target = $region69
  $region68: #{pose_encoder_conv_forward.1} parent=0 // pred_region
    _
  $region69: #{pose_encoder_conv_forward.1} parent=0 // pred_fallthru
    _
  // Predicated region
  $region70: #{pose_encoder_conv_forward.1} parent=0 // pred_check
    _
  $region71: #{pose_encoder_conv_forward.1} parent=0 // pred_check_branch
    %68 = sbr.rel (0) target = $region73
  $region72: #{pose_encoder_conv_forward.1} parent=0 // pred_region
    _
  $region73: #{pose_encoder_conv_forward.1} parent=0 // pred_fallthru
    _
  // Predicated region
  $region74: #{pose_encoder_conv_forward.1} parent=0 // pred_check
    _
  $region75: #{pose_encoder_conv_forward.1} parent=0 // pred_check_branch
    %70 = sbr.rel (0) target = $region77
  $region76: #{pose_encoder_conv_forward.1} parent=0 // pred_region
    _
  $region77: #{pose_encoder_conv_forward.1} parent=0 // pred_fallthru
    _
  // Predicated region
  $region78: #{pose_encoder_conv_forward.1} parent=0 // pred_check
    _
  $region79: #{pose_encoder_conv_forward.1} parent=0 // pred_check_branch
    %72 = sbr.rel (0) target = $region81
  $region80: #{pose_encoder_conv_forward.1} parent=0 // pred_region
    _
  $region81: #{pose_encoder_conv_forward.1} parent=0 // pred_fallthru
    _
  // Predicated region
  $region82: #{pose_encoder_conv_forward.1} parent=0 // pred_check
    _
  $region83: #{pose_encoder_conv_forward.1} parent=0 // pred_check_branch
    %74 = sbr.rel (0) target = $region85
  $region84: #{pose_encoder_conv_forward.1} parent=0 // pred_region
    _
  $region85: #{pose_encoder_conv_forward.1} parent=0 // pred_fallthru
    _
  // Predicated region
  $region86: #{pose_encoder_conv_forward.1} parent=0 // pred_check
    _
  $region87: #{pose_encoder_conv_forward.1} parent=0 // pred_check_branch
    %76 = sbr.rel (0) target = $region89
  $region88: #{pose_encoder_conv_forward.1} parent=0 // pred_region
    _
  $region89: #{pose_encoder_conv_forward.1} parent=0 // pred_fallthru
    _
  // Predicated region
  $region90: #{pose_encoder_conv_forward.1} parent=0 // pred_check
    _
  $region91: #{pose_encoder_conv_forward.1} parent=0 // pred_check_branch
    %78 = sbr.rel (0) target = $region93
  $region92: #{pose_encoder_conv_forward.1} parent=0 // pred_region
    _
  $region93: #{pose_encoder_conv_forward.1} parent=0 // pred_fallthru
    _
  // Predicated region
  $region94: #{pose_encoder_conv_forward.1} parent=0 // pred_check
    _
  $region95: #{pose_encoder_conv_forward.1} parent=0 // pred_check_branch
    %80 = sbr.rel (0) target = $region97
  $region96: #{pose_encoder_conv_forward.1} parent=0 // pred_region
    _
  $region97: #{pose_encoder_conv_forward.1} parent=0 // pred_fallthru
    _
  // Predicated region
  $region98: #{pose_encoder_conv_forward.1} parent=0 // pred_check
    _
  $region99: #{pose_encoder_conv_forward.1} parent=0 // pred_check_branch
    %82 = sbr.rel (0) target = $region101
  $region100: #{pose_encoder_conv_forward.1} parent=0 // pred_region
    _
  $region101: #{pose_encoder_conv_forward.1} parent=0 // pred_fallthru
    _
  // Predicated region
  $region102: #{pose_encoder_conv_forward.1} parent=0 // pred_check
    _
  $region103: #{pose_encoder_conv_forward.1} parent=0 // pred_check_branch
    %84 = sbr.rel (0) target = $region105
  $region104: #{pose_encoder_conv_forward.1} parent=0 // pred_region
    _
  $region105: #{pose_encoder_conv_forward.1} parent=0 // pred_fallthru
    _
  // Predicated region
  $region106: #{pose_encoder_conv_forward.1} parent=0 // pred_check
    _
  $region107: #{pose_encoder_conv_forward.1} parent=0 // pred_check_branch
    %86 = sbr.rel (0) target = $region109
  $region108: #{pose_encoder_conv_forward.1} parent=0 // pred_region
    _
  $region109: #{pose_encoder_conv_forward.1} parent=0 // pred_fallthru
    _
  // Predicated region
  $region110: #{pose_encoder_conv_forward.1} parent=0 // pred_check
    _
  $region111: #{pose_encoder_conv_forward.1} parent=0 // pred_check_branch
    %88 = sbr.rel (0) target = $region113
  $region112: #{pose_encoder_conv_forward.1} parent=0 // pred_region
    _
  $region113: #{pose_encoder_conv_forward.1} parent=0 // pred_fallthru
    _
  %v89 = vld [vmem:[%s0] sm:$0xff]
  %v90 = vld [vmem:[%s0 + $0x8] sm:$0xff]
  %v91 = vld [vmem:[%s0 + $0x10] sm:$0xff]
  %v92 = vld [vmem:[%s0 + $0x18] sm:$0xff]
  %v93 = vld [vmem:[%s0 + $0x20] sm:$0xff]
  %v94 = vld [vmem:[%s0 + $0x28] sm:$0xff]
  %v95 = vld [vmem:[%s0 + $0x30] sm:$0xff]
  %v96 = vld [vmem:[%s0 + $0x38] sm:$0xff]
  %v97 = vld [vmem:[%s0 + $0x40] sm:$0xf]
  %v98 = vld [vmem:[%s5] sm:$0xff]
  %v99 = vld [vmem:[%s5 + $0x8] sm:$0xff]
  %v100 = vld [vmem:[%s5 + $0x10] sm:$0xff]
  %v101 = vld [vmem:[%s5 + $0x18] sm:$0xff]
  %vm111 = vcmask 1046528
  %v112 = vrot.slane %v89, 1
  %v113 = vrot.slane %v90, 1
  %v114 = vsel %vm111, %v112, %v113
  %v115 = vrot.slane %v91, 1
  %v116 = vsel %vm111, %v113, %v115
  %v117 = vrot.slane %v92, 1
  %v118 = vsel %vm111, %v115, %v117
  %v119 = vrot.slane %v93, 1
  %v120 = vsel %vm111, %v117, %v119
  %v121 = vrot.slane %v94, 1
  %v122 = vsel %vm111, %v119, %v121
  %v123 = vrot.slane %v95, 1
  %v124 = vsel %vm111, %v121, %v123
  %v125 = vrot.slane %v96, 1
  %v126 = vsel %vm111, %v123, %v125
  %v127 = vrot.slane %v97, 1
  %v128 = vsel %vm111, %v125, %v127
  %vm129 = vcmask 130048
  %v130 = vsel %vm129, %v114, 0
  %v132 = vsel %vm129, %v116, 0
  %v134 = vsel %vm129, %v118, 0
  %v136 = vsel %vm129, %v120, 0
  %v138 = vsel %vm129, %v122, 0
  %v140 = vsel %vm129, %v124, 0
  %v142 = vsel %vm129, %v126, 0
  %v144 = vsel %vm129, %v128, 0
  %v146 = vsel %vm129, %v127, 0
  %148 = vmatpush.msra.mxu0 0.0
  %149 = vmatpush.msra.mxu0 0.0
  %150 = vmatpush.msra.mxu0 0.0
  %151 = vmatpush.msra.mxu0 0.0
  %152 = vmatpush.msra.mxu0 0.0
  %153 = vmatpush.msra.mxu0 0.0
  %154 = vmatpush.msra.mxu0 0.0
  %155 = vmatpush.msra.mxu0 0.0
  %156 = vmatpush.msra.mxu0 0.0
  %157 = vmatpush.msra.mxu0 0.0
  %158 = vmatpush.msra.mxu0 0.0
  %159 = vmatpush.msra.mxu0 0.0
  %160 = vmatpush.msra.mxu0 0.0
  %161 = vmatpush.msra.mxu0 0.0
  %162 = vmatpush.msra.mxu0 %v101
  %163 = vmatpush.msra.mxu0 %v100
  %164 = vmatmul.f32.gmra.mxu0 %v130
  %v165 = vpop.f32.mrf.mxu0
  %v166 = vadd.f32 0.0, %v165
  %167 = vmatmul.f32.gmra.mxu0 %v132
  %v168 = vpop.f32.mrf.mxu0
  %v169 = vadd.f32 0.0, %v168
  %170 = vmatmul.f32.gmra.mxu0 %v134
  %v171 = vpop.f32.mrf.mxu0
  %v172 = vadd.f32 0.0, %v171
  %173 = vmatmul.f32.gmra.mxu0 %v136
  %v174 = vpop.f32.mrf.mxu0
  %v175 = vadd.f32 0.0, %v174
  %176 = vmatmul.f32.gmra.mxu0 %v138
  %v177 = vpop.f32.mrf.mxu0
  %v178 = vadd.f32 0.0, %v177
  %179 = vmatmul.f32.gmra.mxu0 %v140
  %v180 = vpop.f32.mrf.mxu0
  %v181 = vadd.f32 0.0, %v180
  %182 = vmatmul.f32.gmra.mxu0 %v142
  %v183 = vpop.f32.mrf.mxu0
  %v184 = vadd.f32 0.0, %v183
  %185 = vmatmul.f32.gmra.mxu0 %v144
  %v186 = vpop.f32.mrf.mxu0
  %v187 = vadd.f32 0.0, %v186
  %188 = vmatmul.f32.gmra.mxu0 %v146
  %v189 = vpop.f32.mrf.mxu0
  %v190 = vadd.f32 0.0, %v189
  %191 = vdwg.mxu0
  %v192 = vsel %vm129, %v89, 0
  %v194 = vsel %vm129, %v90, 0
  %v196 = vsel %vm129, %v91, 0
  %v198 = vsel %vm129, %v92, 0
  %v200 = vsel %vm129, %v93, 0
  %v202 = vsel %vm129, %v94, 0
  %v204 = vsel %vm129, %v95, 0
  %v206 = vsel %vm129, %v96, 0
  %v208 = vsel %vm129, %v97, 0
  %210 = vmatpush.msra.mxu0 0.0
  %211 = vmatpush.msra.mxu0 0.0
  %212 = vmatpush.msra.mxu0 0.0
  %213 = vmatpush.msra.mxu0 0.0
  %214 = vmatpush.msra.mxu0 0.0
  %215 = vmatpush.msra.mxu0 0.0
  %216 = vmatpush.msra.mxu0 0.0
  %217 = vmatpush.msra.mxu0 0.0
  %218 = vmatpush.msra.mxu0 0.0
  %219 = vmatpush.msra.mxu0 0.0
  %220 = vmatpush.msra.mxu0 0.0
  %221 = vmatpush.msra.mxu0 0.0
  %222 = vmatpush.msra.mxu0 0.0
  %223 = vmatpush.msra.mxu0 0.0
  %224 = vmatpush.msra.mxu0 %v99
  %225 = vmatpush.msra.mxu0 %v98
  %226 = vmatmul.f32.gmra.mxu0 %v192
  %v227 = vpop.f32.mrf.mxu0
  %v228 = vadd.f32 %v166, %v227
  %229 = vmatmul.f32.gmra.mxu0 %v194
  %v230 = vpop.f32.mrf.mxu0
  %v231 = vadd.f32 %v169, %v230
  %232 = vmatmul.f32.gmra.mxu0 %v196
  %v233 = vpop.f32.mrf.mxu0
  %v234 = vadd.f32 %v172, %v233
  %235 = vmatmul.f32.gmra.mxu0 %v198
  %v236 = vpop.f32.mrf.mxu0
  %v237 = vadd.f32 %v175, %v236
  %238 = vmatmul.f32.gmra.mxu0 %v200
  %v239 = vpop.f32.mrf.mxu0
  %v240 = vadd.f32 %v178, %v239
  %241 = vmatmul.f32.gmra.mxu0 %v202
  %v242 = vpop.f32.mrf.mxu0
  %v243 = vadd.f32 %v181, %v242
  %244 = vmatmul.f32.gmra.mxu0 %v204
  %v245 = vpop.f32.mrf.mxu0
  %v246 = vadd.f32 %v184, %v245
  %247 = vmatmul.f32.gmra.mxu0 %v206
  %v248 = vpop.f32.mrf.mxu0
  %v249 = vadd.f32 %v187, %v248
  %250 = vmatmul.f32.gmra.mxu0 %v208
  %v251 = vpop.f32.mrf.mxu0
  %v252 = vadd.f32 %v190, %v251
  %253 = vdwg.mxu0
  %v254 = vld [vmem:[%s5 + $0x20] sm:$0xff]
  %v255 = vld [vmem:[%s5 + $0x28] sm:$0xff]
  %vm256 = vcmask 1045504
  %v257 = vrot.slane %v89, 2
  %v258 = vrot.slane %v90, 2
  %v259 = vsel %vm256, %v257, %v258
  %v260 = vrot.slane %v91, 2
  %v261 = vsel %vm256, %v258, %v260
  %v262 = vrot.slane %v92, 2
  %v263 = vsel %vm256, %v260, %v262
  %v264 = vrot.slane %v93, 2
  %v265 = vsel %vm256, %v262, %v264
  %v266 = vrot.slane %v94, 2
  %v267 = vsel %vm256, %v264, %v266
  %v268 = vrot.slane %v95, 2
  %v269 = vsel %vm256, %v266, %v268
  %v270 = vrot.slane %v96, 2
  %v271 = vsel %vm256, %v268, %v270
  %v272 = vrot.slane %v97, 2
  %v273 = vsel %vm256, %v270, %v272
  %v274 = vsel %vm129, %v259, 0
  %v276 = vsel %vm129, %v261, 0
  %v278 = vsel %vm129, %v263, 0
  %v280 = vsel %vm129, %v265, 0
  %v282 = vsel %vm129, %v267, 0
  %v284 = vsel %vm129, %v269, 0
  %v286 = vsel %vm129, %v271, 0
  %v288 = vsel %vm129, %v273, 0
  %v290 = vsel %vm129, %v272, 0
  %292 = vmatpush.msra.mxu0 0.0
  %293 = vmatpush.msra.mxu0 0.0
  %294 = vmatpush.msra.mxu0 0.0
  %295 = vmatpush.msra.mxu0 0.0
  %296 = vmatpush.msra.mxu0 0.0
  %297 = vmatpush.msra.mxu0 0.0
  %298 = vmatpush.msra.mxu0 0.0
  %299 = vmatpush.msra.mxu0 0.0
  %300 = vmatpush.msra.mxu0 0.0
  %301 = vmatpush.msra.mxu0 0.0
  %302 = vmatpush.msra.mxu0 0.0
  %303 = vmatpush.msra.mxu0 0.0
  %304 = vmatpush.msra.mxu0 0.0
  %305 = vmatpush.msra.mxu0 0.0
  %306 = vmatpush.msra.mxu0 %v255
  %307 = vmatpush.msra.mxu0 %v254
  %308 = vmatmul.f32.gmra.mxu0 %v274
  %v309 = vpop.f32.mrf.mxu0
  %v310 = vadd.f32 0.0, %v309
  %311 = vmatmul.f32.gmra.mxu0 %v276
  %v312 = vpop.f32.mrf.mxu0
  %v313 = vadd.f32 0.0, %v312
  %314 = vmatmul.f32.gmra.mxu0 %v278
  %v315 = vpop.f32.mrf.mxu0
  %v316 = vadd.f32 0.0, %v315
  %317 = vmatmul.f32.gmra.mxu0 %v280
  %v318 = vpop.f32.mrf.mxu0
  %v319 = vadd.f32 0.0, %v318
  %320 = vmatmul.f32.gmra.mxu0 %v282
  %v321 = vpop.f32.mrf.mxu0
  %v322 = vadd.f32 0.0, %v321
  %323 = vmatmul.f32.gmra.mxu0 %v284
  %v324 = vpop.f32.mrf.mxu0
  %v325 = vadd.f32 0.0, %v324
  %326 = vmatmul.f32.gmra.mxu0 %v286
  %v327 = vpop.f32.mrf.mxu0
  %v328 = vadd.f32 0.0, %v327
  %329 = vmatmul.f32.gmra.mxu0 %v288
  %v330 = vpop.f32.mrf.mxu0
  %v331 = vadd.f32 0.0, %v330
  %332 = vmatmul.f32.gmra.mxu0 %v290
  %v333 = vpop.f32.mrf.mxu0
  %v334 = vadd.f32 0.0, %v333
  %335 = vdwg.mxu0
  %v336 = vadd.f32 %v228, %v310
  %v337 = vadd.f32 %v231, %v313
  %v338 = vadd.f32 %v234, %v316
  %v339 = vadd.f32 %v237, %v319
  %v340 = vadd.f32 %v240, %v322
  %v341 = vadd.f32 %v243, %v325
  %v342 = vadd.f32 %v246, %v328
  %v343 = vadd.f32 %v249, %v331
  %v344 = vadd.f32 %v252, %v334
  %v345 = vld [vmem:[%s6] sm:$0x1]
  %v346 = vld [vmem:[%s7] sm:$0x1]
  %v347 = vld [vmem:[%s1] sm:$0xff]
  %v348 = vld [vmem:[%s1 + $0x8] sm:$0xff]
  %v349 = vld [vmem:[%s1 + $0x10] sm:$0xff]
  %v350 = vld [vmem:[%s1 + $0x18] sm:$0xff]
  %v351 = vld [vmem:[%s1 + $0x20] sm:$0xff]
  %v352 = vld [vmem:[%s1 + $0x28] sm:$0xff]
  %v353 = vld [vmem:[%s1 + $0x30] sm:$0xff]
  %v354 = vld [vmem:[%s1 + $0x38] sm:$0xff]
  %v355 = vld [vmem:[%s1 + $0x40] sm:$0x3]
  %357 = vset.pattern.permute.xlu0 0
  %358 = vperm.xlu0 %357, %v347
  %v359 = vpop.permute.xlu0 %358
  %362 = vset.pattern.permute.xlu0 0
  %363 = vperm.xlu0 %362, %v348
  %v364 = vpop.permute.xlu0 %363
  %367 = vset.pattern.permute.xlu0 0
  %368 = vperm.xlu0 %367, %v349
  %v369 = vpop.permute.xlu0 %368
  %372 = vset.pattern.permute.xlu0 0
  %373 = vperm.xlu0 %372, %v350
  %v374 = vpop.permute.xlu0 %373
  %377 = vset.pattern.permute.xlu0 0
  %378 = vperm.xlu0 %377, %v351
  %v379 = vpop.permute.xlu0 %378
  %382 = vset.pattern.permute.xlu0 0
  %383 = vperm.xlu0 %382, %v352
  %v384 = vpop.permute.xlu0 %383
  %387 = vset.pattern.permute.xlu0 0
  %388 = vperm.xlu0 %387, %v353
  %v389 = vpop.permute.xlu0 %388
  %392 = vset.pattern.permute.xlu0 0
  %393 = vperm.xlu0 %392, %v354
  %v394 = vpop.permute.xlu0 %393
  %397 = vset.pattern.permute.xlu0 0
  %398 = vperm.xlu0 %397, %v355
  %v399 = vpop.permute.xlu0 %398
  %v401 = vmul.f32 %v336, %v359
  %v402 = vmul.f32 %v337, %v364
  %v403 = vmul.f32 %v338, %v369
  %v404 = vmul.f32 %v339, %v374
  %v405 = vmul.f32 %v340, %v379
  %v406 = vmul.f32 %v341, %v384
  %v407 = vmul.f32 %v342, %v389
  %v408 = vmul.f32 %v343, %v394
  %v409 = vmul.f32 %v344, %v399
  %vm410 = vcmask 261120
  %v411 = vsel %vm410, %v401, 0.0
  %v412 = vsel %vm410, %v402, 0.0
  %v413 = vadd.f32 %v411, %v412
  %v414 = vsel %vm410, %v403, 0.0
  %v415 = vadd.f32 %v413, %v414
  %v416 = vsel %vm410, %v404, 0.0
  %v417 = vadd.f32 %v415, %v416
  %v418 = vsel %vm410, %v405, 0.0
  %v419 = vadd.f32 %v417, %v418
  %v420 = vsel %vm410, %v406, 0.0
  %v421 = vadd.f32 %v419, %v420
  %v422 = vsel %vm410, %v407, 0.0
  %v423 = vadd.f32 %v421, %v422
  %v424 = vsel %vm410, %v408, 0.0
  %v425 = vadd.f32 %v423, %v424
  %vm426 = vcmask 254976
  %v427 = vsel %vm426, %v409, 0.0
  %v428 = vadd.f32 %v425, %v427
  %v429 = vrot.slane %v428, 4
  %v430 = vadd.f32 %v428, %v429
  %v431 = vrot.slane %v430, 2
  %v432 = vadd.f32 %v430, %v431
  %v433 = vrot.slane %v432, 1
  %v434 = vadd.f32 %v432, %v433
  %v435 = vmul.f32 %v434, 0.015625
  %v436 = vsub.f32 %v336, %v435
  %v437 = vsub.f32 %v337, %v435
  %v438 = vsub.f32 %v338, %v435
  %v439 = vsub.f32 %v339, %v435
  %v440 = vsub.f32 %v340, %v435
  %v441 = vsub.f32 %v341, %v435
  %v442 = vsub.f32 %v342, %v435
  %v443 = vsub.f32 %v343, %v435
  %v444 = vsub.f32 %v344, %v435
  %v445 = vmul.f32 %v436, %v359
  %v446 = vmul.f32 %v437, %v364
  %v447 = vmul.f32 %v438, %v369
  %v448 = vmul.f32 %v439, %v374
  %v449 = vmul.f32 %v440, %v379
  %v450 = vmul.f32 %v441, %v384
  %v451 = vmul.f32 %v442, %v389
  %v452 = vmul.f32 %v443, %v394
  %v453 = vmul.f32 %v444, %v399
  %v454 = vmul.f32 %v445, %v445
  %v455 = vmul.f32 %v446, %v446
  %v456 = vmul.f32 %v447, %v447
  %v457 = vmul.f32 %v448, %v448
  %v458 = vmul.f32 %v449, %v449
  %v459 = vmul.f32 %v450, %v450
  %v460 = vmul.f32 %v451, %v451
  %v461 = vmul.f32 %v452, %v452
  %v462 = vmul.f32 %v453, %v453
  %v463 = vsel %vm410, %v454, 0.0
  %v464 = vsel %vm410, %v455, 0.0
  %v465 = vadd.f32 %v463, %v464
  %v466 = vsel %vm410, %v456, 0.0
  %v467 = vadd.f32 %v465, %v466
  %v468 = vsel %vm410, %v457, 0.0
  %v469 = vadd.f32 %v467, %v468
  %v470 = vsel %vm410, %v458, 0.0
  %v471 = vadd.f32 %v469, %v470
  %v472 = vsel %vm410, %v459, 0.0
  %v473 = vadd.f32 %v471, %v472
  %v474 = vsel %vm410, %v460, 0.0
  %v475 = vadd.f32 %v473, %v474
  %v476 = vsel %vm410, %v461, 0.0
  %v477 = vadd.f32 %v475, %v476
  %v478 = vsel %vm426, %v462, 0.0
  %v479 = vadd.f32 %v477, %v478
  %v480 = vrot.slane %v479, 4
  %v481 = vadd.f32 %v479, %v480
  %v482 = vrot.slane %v481, 2
  %v483 = vadd.f32 %v481, %v482
  %v484 = vrot.slane %v483, 1
  %v485 = vadd.f32 %v483, %v484
  %v486 = vmul.f32 %v485, 0.015625
  %v487 = vadd.f32 %v486, 1e-05
  %v488 = vrsqrt.pop %v487
  %v489 = vmul.f32 %v488, %v487
  %v490 = vmul.f32 %v489, %v488
  %v491 = vmul.f32 0.5, %v490
  %v492 = vsub.f32 1.5, %v491
  %v493 = vmul.f32 %v488, %v492
  %vm494 = vweird.f32 %v487
  %vm495 = vweird.f32 %v488
  %vm496 = vmor %vm494, %vm495
  %v497 = vsel %vm496, %v488, %v493
  %v498 = vmul.f32 %v497, %v345
  %v499 = vperm.slane %v498, 0
  %v500 = vmul.f32 %v436, %v499
  %v501 = vmul.f32 %v437, %v499
  %v502 = vmul.f32 %v438, %v499
  %v503 = vmul.f32 %v439, %v499
  %v504 = vmul.f32 %v440, %v499
  %v505 = vmul.f32 %v441, %v499
  %v506 = vmul.f32 %v442, %v499
  %v507 = vmul.f32 %v443, %v499
  %v508 = vmul.f32 %v444, %v499
  %v510 = vperm.slane %v346, 0
  %v512 = vadd.f32 %v500, %v510
  %v513 = vadd.f32 %v501, %v510
  %v514 = vadd.f32 %v502, %v510
  %v515 = vadd.f32 %v503, %v510
  %v516 = vadd.f32 %v504, %v510
  %v517 = vadd.f32 %v505, %v510
  %v518 = vadd.f32 %v506, %v510
  %v519 = vadd.f32 %v507, %v510
  %v520 = vadd.f32 %v508, %v510
  %vm521 = vcmp.ge.f32.partialorder %v512, 0.0
  %vm522 = vcmp.ge.f32.partialorder %v513, 0.0
  %vm523 = vcmp.ge.f32.partialorder %v514, 0.0
  %vm524 = vcmp.ge.f32.partialorder %v515, 0.0
  %vm525 = vcmp.ge.f32.partialorder %v516, 0.0
  %vm526 = vcmp.ge.f32.partialorder %v517, 0.0
  %vm527 = vcmp.ge.f32.partialorder %v518, 0.0
  %vm528 = vcmp.ge.f32.partialorder %v519, 0.0
  %vm529 = vcmp.ge.f32.partialorder %v520, 0.0
  %v530 = vmul.f32 %v512, 0.2
  %v531 = vmul.f32 %v513, 0.2
  %v532 = vmul.f32 %v514, 0.2
  %v533 = vmul.f32 %v515, 0.2
  %v534 = vmul.f32 %v516, 0.2
  %v535 = vmul.f32 %v517, 0.2
  %v536 = vmul.f32 %v518, 0.2
  %v537 = vmul.f32 %v519, 0.2
  %v538 = vmul.f32 %v520, 0.2
  %v539 = vsel %vm521, %v512, %v530
  %v540 = vsel %vm522, %v513, %v531
  %v541 = vsel %vm523, %v514, %v532
  %v542 = vsel %vm524, %v515, %v533
  %v543 = vsel %vm525, %v516, %v534
  %v544 = vsel %vm526, %v517, %v535
  %v545 = vsel %vm527, %v518, %v536
  %v546 = vsel %vm528, %v519, %v537
  %v547 = vsel %vm529, %v520, %v538
  %v548 = vld [vmem:[%s8] sm:$0xff]
  %v549 = vld [vmem:[%s8 + $0x8] sm:$0xff]
  %v550 = vld [vmem:[%s8 + $0x10] sm:$0xff]
  %v551 = vld [vmem:[%s8 + $0x18] sm:$0xff]
  %v552 = vld [vmem:[%s8 + $0x20] sm:$0xff]
  %v553 = vld [vmem:[%s8 + $0x28] sm:$0xff]
  %v554 = vld [vmem:[%s8 + $0x30] sm:$0xff]
  %v555 = vld [vmem:[%s8 + $0x38] sm:$0xff]
  %v565 = vrot.slane %v539, 1
  %v566 = vrot.slane %v540, 1
  %v567 = vsel %vm111, %v565, %v566
  %v568 = vrot.slane %v541, 1
  %v569 = vsel %vm111, %v566, %v568
  %v570 = vrot.slane %v542, 1
  %v571 = vsel %vm111, %v568, %v570
  %v572 = vrot.slane %v543, 1
  %v573 = vsel %vm111, %v570, %v572
  %v574 = vrot.slane %v544, 1
  %v575 = vsel %vm111, %v572, %v574
  %v576 = vrot.slane %v545, 1
  %v577 = vsel %vm111, %v574, %v576
  %v578 = vrot.slane %v546, 1
  %v579 = vsel %vm111, %v576, %v578
  %v580 = vrot.slane %v547, 1
  %v581 = vsel %vm111, %v578, %v580
  %v582 = vsel %vm410, %v567, 0
  %v584 = vsel %vm410, %v569, 0
  %v586 = vsel %vm410, %v571, 0
  %v588 = vsel %vm410, %v573, 0
  %v590 = vsel %vm410, %v575, 0
  %v592 = vsel %vm410, %v577, 0
  %v594 = vsel %vm410, %v579, 0
  %v596 = vsel %vm410, %v581, 0
  %598 = vmatpush.msra.mxu0 0.0
  %599 = vmatpush.msra.mxu0 0.0
  %600 = vmatpush.msra.mxu0 0.0
  %601 = vmatpush.msra.mxu0 0.0
  %602 = vmatpush.msra.mxu0 0.0
  %603 = vmatpush.msra.mxu0 0.0
  %604 = vmatpush.msra.mxu0 0.0
  %605 = vmatpush.msra.mxu0 0.0
  %606 = vmatpush.msra.mxu0 0.0
  %607 = vmatpush.msra.mxu0 0.0
  %608 = vmatpush.msra.mxu0 0.0
  %609 = vmatpush.msra.mxu0 0.0
  %610 = vmatpush.msra.mxu0 %v555
  %611 = vmatpush.msra.mxu0 %v554
  %612 = vmatpush.msra.mxu0 %v553
  %613 = vmatpush.msra.mxu0 %v552
  %614 = vmatmul.f32.gmra.mxu0 %v582
  %v615 = vpop.f32.mrf.mxu0
  %v616 = vadd.f32 0.0, %v615
  %617 = vmatmul.f32.gmra.mxu0 %v584
  %v618 = vpop.f32.mrf.mxu0
  %v619 = vadd.f32 0.0, %v618
  %620 = vmatmul.f32.gmra.mxu0 %v586
  %v621 = vpop.f32.mrf.mxu0
  %v622 = vadd.f32 0.0, %v621
  %623 = vmatmul.f32.gmra.mxu0 %v588
  %v624 = vpop.f32.mrf.mxu0
  %v625 = vadd.f32 0.0, %v624
  %626 = vmatmul.f32.gmra.mxu0 %v590
  %v627 = vpop.f32.mrf.mxu0
  %v628 = vadd.f32 0.0, %v627
  %629 = vmatmul.f32.gmra.mxu0 %v592
  %v630 = vpop.f32.mrf.mxu0
  %v631 = vadd.f32 0.0, %v630
  %632 = vmatmul.f32.gmra.mxu0 %v594
  %v633 = vpop.f32.mrf.mxu0
  %v634 = vadd.f32 0.0, %v633
  %635 = vmatmul.f32.gmra.mxu0 %v596
  %v636 = vpop.f32.mrf.mxu0
  %v637 = vadd.f32 0.0, %v636
  %638 = vdwg.mxu0
  %v639 = vsel %vm410, %v539, 0
  %v641 = vsel %vm410, %v540, 0
  %v643 = vsel %vm410, %v541, 0
  %v645 = vsel %vm410, %v542, 0
  %v647 = vsel %vm410, %v543, 0
  %v649 = vsel %vm410, %v544, 0
  %v651 = vsel %vm410, %v545, 0
  %v653 = vsel %vm410, %v546, 0
  %655 = vmatpush.msra.mxu0 0.0
  %656 = vmatpush.msra.mxu0 0.0
  %657 = vmatpush.msra.mxu0 0.0
  %658 = vmatpush.msra.mxu0 0.0
  %659 = vmatpush.msra.mxu0 0.0
  %660 = vmatpush.msra.mxu0 0.0
  %661 = vmatpush.msra.mxu0 0.0
  %662 = vmatpush.msra.mxu0 0.0
  %663 = vmatpush.msra.mxu0 0.0
  %664 = vmatpush.msra.mxu0 0.0
  %665 = vmatpush.msra.mxu0 0.0
  %666 = vmatpush.msra.mxu0 0.0
  %667 = vmatpush.msra.mxu0 %v551
  %668 = vmatpush.msra.mxu0 %v550
  %669 = vmatpush.msra.mxu0 %v549
  %670 = vmatpush.msra.mxu0 %v548
  %671 = vmatmul.f32.gmra.mxu0 %v639
  %v672 = vpop.f32.mrf.mxu0
  %v673 = vadd.f32 %v616, %v672
  %674 = vmatmul.f32.gmra.mxu0 %v641
  %v675 = vpop.f32.mrf.mxu0
  %v676 = vadd.f32 %v619, %v675
  %677 = vmatmul.f32.gmra.mxu0 %v643
  %v678 = vpop.f32.mrf.mxu0
  %v679 = vadd.f32 %v622, %v678
  %680 = vmatmul.f32.gmra.mxu0 %v645
  %v681 = vpop.f32.mrf.mxu0
  %v682 = vadd.f32 %v625, %v681
  %683 = vmatmul.f32.gmra.mxu0 %v647
  %v684 = vpop.f32.mrf.mxu0
  %v685 = vadd.f32 %v628, %v684
  %686 = vmatmul.f32.gmra.mxu0 %v649
  %v687 = vpop.f32.mrf.mxu0
  %v688 = vadd.f32 %v631, %v687
  %689 = vmatmul.f32.gmra.mxu0 %v651
  %v690 = vpop.f32.mrf.mxu0
  %v691 = vadd.f32 %v634, %v690
  %692 = vmatmul.f32.gmra.mxu0 %v653
  %v693 = vpop.f32.mrf.mxu0
  %v694 = vadd.f32 %v637, %v693
  %695 = vdwg.mxu0
  %v696 = vld [vmem:[%s8 + $0x40] sm:$0xff]
  %v697 = vld [vmem:[%s8 + $0x48] sm:$0xff]
  %v698 = vld [vmem:[%s8 + $0x50] sm:$0xff]
  %v699 = vld [vmem:[%s8 + $0x58] sm:$0xff]
  %v700 = vrot.slane %v539, 2
  %v701 = vrot.slane %v540, 2
  %v702 = vsel %vm256, %v700, %v701
  %v703 = vrot.slane %v541, 2
  %v704 = vsel %vm256, %v701, %v703
  %v705 = vrot.slane %v542, 2
  %v706 = vsel %vm256, %v703, %v705
  %v707 = vrot.slane %v543, 2
  %v708 = vsel %vm256, %v705, %v707
  %v709 = vrot.slane %v544, 2
  %v710 = vsel %vm256, %v707, %v709
  %v711 = vrot.slane %v545, 2
  %v712 = vsel %vm256, %v709, %v711
  %v713 = vrot.slane %v546, 2
  %v714 = vsel %vm256, %v711, %v713
  %v715 = vrot.slane %v547, 2
  %v716 = vsel %vm256, %v713, %v715
  %v717 = vsel %vm410, %v702, 0
  %v719 = vsel %vm410, %v704, 0
  %v721 = vsel %vm410, %v706, 0
  %v723 = vsel %vm410, %v708, 0
  %v725 = vsel %vm410, %v710, 0
  %v727 = vsel %vm410, %v712, 0
  %v729 = vsel %vm410, %v714, 0
  %v731 = vsel %vm410, %v716, 0
  %733 = vmatpush.msra.mxu0 0.0
  %734 = vmatpush.msra.mxu0 0.0
  %735 = vmatpush.msra.mxu0 0.0
  %736 = vmatpush.msra.mxu0 0.0
  %737 = vmatpush.msra.mxu0 0.0
  %738 = vmatpush.msra.mxu0 0.0
  %739 = vmatpush.msra.mxu0 0.0
  %740 = vmatpush.msra.mxu0 0.0
  %741 = vmatpush.msra.mxu0 0.0
  %742 = vmatpush.msra.mxu0 0.0
  %743 = vmatpush.msra.mxu0 0.0
  %744 = vmatpush.msra.mxu0 0.0
  %745 = vmatpush.msra.mxu0 %v699
  %746 = vmatpush.msra.mxu0 %v698
  %747 = vmatpush.msra.mxu0 %v697
  %748 = vmatpush.msra.mxu0 %v696
  %749 = vmatmul.f32.gmra.mxu0 %v717
  %v750 = vpop.f32.mrf.mxu0
  %v751 = vadd.f32 0.0, %v750
  %752 = vmatmul.f32.gmra.mxu0 %v719
  %v753 = vpop.f32.mrf.mxu0
  %v754 = vadd.f32 0.0, %v753
  %755 = vmatmul.f32.gmra.mxu0 %v721
  %v756 = vpop.f32.mrf.mxu0
  %v757 = vadd.f32 0.0, %v756
  %758 = vmatmul.f32.gmra.mxu0 %v723
  %v759 = vpop.f32.mrf.mxu0
  %v760 = vadd.f32 0.0, %v759
  %761 = vmatmul.f32.gmra.mxu0 %v725
  %v762 = vpop.f32.mrf.mxu0
  %v763 = vadd.f32 0.0, %v762
  %764 = vmatmul.f32.gmra.mxu0 %v727
  %v765 = vpop.f32.mrf.mxu0
  %v766 = vadd.f32 0.0, %v765
  %767 = vmatmul.f32.gmra.mxu0 %v729
  %v768 = vpop.f32.mrf.mxu0
  %v769 = vadd.f32 0.0, %v768
  %770 = vmatmul.f32.gmra.mxu0 %v731
  %v771 = vpop.f32.mrf.mxu0
  %v772 = vadd.f32 0.0, %v771
  %773 = vdwg.mxu0
  %v774 = vadd.f32 %v673, %v751
  %v775 = vadd.f32 %v676, %v754
  %v776 = vadd.f32 %v679, %v757
  %v777 = vadd.f32 %v682, %v760
  %v778 = vadd.f32 %v685, %v763
  %v779 = vadd.f32 %v688, %v766
  %v780 = vadd.f32 %v691, %v769
  %v781 = vadd.f32 %v694, %v772
  %v782 = vld [vmem:[%s9] sm:$0x1]
  %v783 = vld [vmem:[%s10] sm:$0x1]
  %v784 = vld [vmem:[%s2] sm:$0xff]
  %v785 = vld [vmem:[%s2 + $0x8] sm:$0xff]
  %v786 = vld [vmem:[%s2 + $0x10] sm:$0xff]
  %v787 = vld [vmem:[%s2 + $0x18] sm:$0xff]
  %v788 = vld [vmem:[%s2 + $0x20] sm:$0xff]
  %v789 = vld [vmem:[%s2 + $0x28] sm:$0xff]
  %v790 = vld [vmem:[%s2 + $0x30] sm:$0xff]
  %v791 = vld [vmem:[%s2 + $0x38] sm:$0xff]
  %793 = vset.pattern.permute.xlu0 0
  %794 = vperm.xlu0 %793, %v784
  %v795 = vpop.permute.xlu0 %794
  %798 = vset.pattern.permute.xlu0 0
  %799 = vperm.xlu0 %798, %v785
  %v800 = vpop.permute.xlu0 %799
  %803 = vset.pattern.permute.xlu0 0
  %804 = vperm.xlu0 %803, %v786
  %v805 = vpop.permute.xlu0 %804
  %808 = vset.pattern.permute.xlu0 0
  %809 = vperm.xlu0 %808, %v787
  %v810 = vpop.permute.xlu0 %809
  %813 = vset.pattern.permute.xlu0 0
  %814 = vperm.xlu0 %813, %v788
  %v815 = vpop.permute.xlu0 %814
  %818 = vset.pattern.permute.xlu0 0
  %819 = vperm.xlu0 %818, %v789
  %v820 = vpop.permute.xlu0 %819
  %823 = vset.pattern.permute.xlu0 0
  %824 = vperm.xlu0 %823, %v790
  %v825 = vpop.permute.xlu0 %824
  %828 = vset.pattern.permute.xlu0 0
  %829 = vperm.xlu0 %828, %v791
  %v830 = vpop.permute.xlu0 %829
  %v832 = vmul.f32 %v774, %v795
  %v833 = vmul.f32 %v775, %v800
  %v834 = vmul.f32 %v776, %v805
  %v835 = vmul.f32 %v777, %v810
  %v836 = vmul.f32 %v778, %v815
  %v837 = vmul.f32 %v779, %v820
  %v838 = vmul.f32 %v780, %v825
  %v839 = vmul.f32 %v781, %v830
  %vm840 = vcmask 523264
  %v841 = vsel %vm840, %v832, 0.0
  %v842 = vsel %vm840, %v833, 0.0
  %v843 = vadd.f32 %v841, %v842
  %v844 = vsel %vm840, %v834, 0.0
  %v845 = vadd.f32 %v843, %v844
  %v846 = vsel %vm840, %v835, 0.0
  %v847 = vadd.f32 %v845, %v846
  %v848 = vsel %vm840, %v836, 0.0
  %v849 = vadd.f32 %v847, %v848
  %v850 = vsel %vm840, %v837, 0.0
  %v851 = vadd.f32 %v849, %v850
  %v852 = vsel %vm840, %v838, 0.0
  %v853 = vadd.f32 %v851, %v852
  %v854 = vsel %vm840, %v839, 0.0
  %v855 = vadd.f32 %v853, %v854
  %v856 = vrot.slane %v855, 4
  %v857 = vadd.f32 %v855, %v856
  %v858 = vrot.slane %v857, 2
  %v859 = vadd.f32 %v857, %v858
  %v860 = vrot.slane %v859, 1
  %v861 = vadd.f32 %v859, %v860
  %v862 = vmul.f32 %v861, 0.016666668
  %v863 = vsub.f32 %v774, %v862
  %v864 = vsub.f32 %v775, %v862
  %v865 = vsub.f32 %v776, %v862
  %v866 = vsub.f32 %v777, %v862
  %v867 = vsub.f32 %v778, %v862
  %v868 = vsub.f32 %v779, %v862
  %v869 = vsub.f32 %v780, %v862
  %v870 = vsub.f32 %v781, %v862
  %v871 = vmul.f32 %v863, %v795
  %v872 = vmul.f32 %v864, %v800
  %v873 = vmul.f32 %v865, %v805
  %v874 = vmul.f32 %v866, %v810
  %v875 = vmul.f32 %v867, %v815
  %v876 = vmul.f32 %v868, %v820
  %v877 = vmul.f32 %v869, %v825
  %v878 = vmul.f32 %v870, %v830
  %v879 = vmul.f32 %v871, %v871
  %v880 = vmul.f32 %v872, %v872
  %v881 = vmul.f32 %v873, %v873
  %v882 = vmul.f32 %v874, %v874
  %v883 = vmul.f32 %v875, %v875
  %v884 = vmul.f32 %v876, %v876
  %v885 = vmul.f32 %v877, %v877
  %v886 = vmul.f32 %v878, %v878
  %v887 = vsel %vm840, %v879, 0.0
  %v888 = vsel %vm840, %v880, 0.0
  %v889 = vadd.f32 %v887, %v888
  %v890 = vsel %vm840, %v881, 0.0
  %v891 = vadd.f32 %v889, %v890
  %v892 = vsel %vm840, %v882, 0.0
  %v893 = vadd.f32 %v891, %v892
  %v894 = vsel %vm840, %v883, 0.0
  %v895 = vadd.f32 %v893, %v894
  %v896 = vsel %vm840, %v884, 0.0
  %v897 = vadd.f32 %v895, %v896
  %v898 = vsel %vm840, %v885, 0.0
  %v899 = vadd.f32 %v897, %v898
  %v900 = vsel %vm840, %v886, 0.0
  %v901 = vadd.f32 %v899, %v900
  %v902 = vrot.slane %v901, 4
  %v903 = vadd.f32 %v901, %v902
  %v904 = vrot.slane %v903, 2
  %v905 = vadd.f32 %v903, %v904
  %v906 = vrot.slane %v905, 1
  %v907 = vadd.f32 %v905, %v906
  %v908 = vmul.f32 %v907, 0.016666668
  %v909 = vadd.f32 %v908, 1e-05
  %v910 = vrsqrt.pop %v909
  %v911 = vmul.f32 %v910, %v909
  %v912 = vmul.f32 %v911, %v910
  %v913 = vmul.f32 0.5, %v912
  %v914 = vsub.f32 1.5, %v913
  %v915 = vmul.f32 %v910, %v914
  %vm916 = vweird.f32 %v909
  %vm917 = vweird.f32 %v910
  %vm918 = vmor %vm916, %vm917
  %v919 = vsel %vm918, %v910, %v915
  %v920 = vmul.f32 %v919, %v782
  %v921 = vperm.slane %v920, 0
  %v922 = vmul.f32 %v863, %v921
  %v923 = vmul.f32 %v864, %v921
  %v924 = vmul.f32 %v865, %v921
  %v925 = vmul.f32 %v866, %v921
  %v926 = vmul.f32 %v867, %v921
  %v927 = vmul.f32 %v868, %v921
  %v928 = vmul.f32 %v869, %v921
  %v929 = vmul.f32 %v870, %v921
  %v931 = vperm.slane %v783, 0
  %v933 = vadd.f32 %v922, %v931
  %v934 = vadd.f32 %v923, %v931
  %v935 = vadd.f32 %v924, %v931
  %v936 = vadd.f32 %v925, %v931
  %v937 = vadd.f32 %v926, %v931
  %v938 = vadd.f32 %v927, %v931
  %v939 = vadd.f32 %v928, %v931
  %v940 = vadd.f32 %v929, %v931
  %vm941 = vcmp.ge.f32.partialorder %v933, 0.0
  %vm942 = vcmp.ge.f32.partialorder %v934, 0.0
  %vm943 = vcmp.ge.f32.partialorder %v935, 0.0
  %vm944 = vcmp.ge.f32.partialorder %v936, 0.0
  %vm945 = vcmp.ge.f32.partialorder %v937, 0.0
  %vm946 = vcmp.ge.f32.partialorder %v938, 0.0
  %vm947 = vcmp.ge.f32.partialorder %v939, 0.0
  %vm948 = vcmp.ge.f32.partialorder %v940, 0.0
  %v949 = vmul.f32 %v933, 0.2
  %v950 = vmul.f32 %v934, 0.2
  %v951 = vmul.f32 %v935, 0.2
  %v952 = vmul.f32 %v936, 0.2
  %v953 = vmul.f32 %v937, 0.2
  %v954 = vmul.f32 %v938, 0.2
  %v955 = vmul.f32 %v939, 0.2
  %v956 = vmul.f32 %v940, 0.2
  %v957 = vsel %vm941, %v933, %v949
  %v958 = vsel %vm942, %v934, %v950
  %v959 = vsel %vm943, %v935, %v951
  %v960 = vsel %vm944, %v936, %v952
  %v961 = vsel %vm945, %v937, %v953
  %v962 = vsel %vm946, %v938, %v954
  %v963 = vsel %vm947, %v939, %v955
  %v964 = vsel %vm948, %v940, %v956
  %v965 = vld [vmem:[%s11] sm:$0xff]
  %v966 = vld [vmem:[%s11 + $0x8] sm:$0xff]
  %v967 = vld [vmem:[%s11 + $0x10] sm:$0xff]
  %v968 = vld [vmem:[%s11 + $0x18] sm:$0xff]
  %v969 = vld [vmem:[%s11 + $0x20] sm:$0xff]
  %v970 = vld [vmem:[%s11 + $0x28] sm:$0xff]
  %v971 = vld [vmem:[%s11 + $0x30] sm:$0xff]
  %v972 = vld [vmem:[%s11 + $0x38] sm:$0xff]
  %v973 = vld [vmem:[%s11 + $0x40] sm:$0xff]
  %v974 = vld [vmem:[%s11 + $0x48] sm:$0xff]
  %v975 = vld [vmem:[%s11 + $0x50] sm:$0xff]
  %v976 = vld [vmem:[%s11 + $0x58] sm:$0xff]
  %v977 = vld [vmem:[%s11 + $0x60] sm:$0xff]
  %v978 = vld [vmem:[%s11 + $0x68] sm:$0xff]
  %v979 = vld [vmem:[%s11 + $0x70] sm:$0xff]
  %v980 = vld [vmem:[%s11 + $0x78] sm:$0xff]
  %v989 = vrot.slane %v957, 1
  %v990 = vrot.slane %v958, 1
  %v991 = vsel %vm111, %v989, %v990
  %v992 = vrot.slane %v959, 1
  %v993 = vsel %vm111, %v990, %v992
  %v994 = vrot.slane %v960, 1
  %v995 = vsel %vm111, %v992, %v994
  %v996 = vrot.slane %v961, 1
  %v997 = vsel %vm111, %v994, %v996
  %v998 = vrot.slane %v962, 1
  %v999 = vsel %vm111, %v996, %v998
  %v1000 = vrot.slane %v963, 1
  %v1001 = vsel %vm111, %v998, %v1000
  %v1002 = vrot.slane %v964, 1
  %v1003 = vsel %vm111, %v1000, %v1002
  %v1004 = vsel %vm840, %v991, 0
  %v1006 = vsel %vm840, %v993, 0
  %v1008 = vsel %vm840, %v995, 0
  %v1010 = vsel %vm840, %v997, 0
  %v1012 = vsel %vm840, %v999, 0
  %v1014 = vsel %vm840, %v1001, 0
  %v1016 = vsel %vm840, %v1003, 0
  %v1018 = vsel %vm840, %v1002, 0
  %1020 = vmatpush.msra.mxu0 0.0
  %1021 = vmatpush.msra.mxu0 0.0
  %1022 = vmatpush.msra.mxu0 0.0
  %1023 = vmatpush.msra.mxu0 0.0
  %1024 = vmatpush.msra.mxu0 0.0
  %1025 = vmatpush.msra.mxu0 0.0
  %1026 = vmatpush.msra.mxu0 0.0
  %1027 = vmatpush.msra.mxu0 0.0
  %1028 = vmatpush.msra.mxu0 %v980
  %1029 = vmatpush.msra.mxu0 %v979
  %1030 = vmatpush.msra.mxu0 %v978
  %1031 = vmatpush.msra.mxu0 %v977
  %1032 = vmatpush.msra.mxu0 %v976
  %1033 = vmatpush.msra.mxu0 %v975
  %1034 = vmatpush.msra.mxu0 %v974
  %1035 = vmatpush.msra.mxu0 %v973
  %1036 = vmatmul.f32.gmra.mxu0 %v1004
  %v1037 = vpop.f32.mrf.mxu0
  %v1038 = vadd.f32 0.0, %v1037
  %1039 = vmatmul.f32.gmra.mxu0 %v1006
  %v1040 = vpop.f32.mrf.mxu0
  %v1041 = vadd.f32 0.0, %v1040
  %1042 = vmatmul.f32.gmra.mxu0 %v1008
  %v1043 = vpop.f32.mrf.mxu0
  %v1044 = vadd.f32 0.0, %v1043
  %1045 = vmatmul.f32.gmra.mxu0 %v1010
  %v1046 = vpop.f32.mrf.mxu0
  %v1047 = vadd.f32 0.0, %v1046
  %1048 = vmatmul.f32.gmra.mxu0 %v1012
  %v1049 = vpop.f32.mrf.mxu0
  %v1050 = vadd.f32 0.0, %v1049
  %1051 = vmatmul.f32.gmra.mxu0 %v1014
  %v1052 = vpop.f32.mrf.mxu0
  %v1053 = vadd.f32 0.0, %v1052
  %1054 = vmatmul.f32.gmra.mxu0 %v1016
  %v1055 = vpop.f32.mrf.mxu0
  %v1056 = vadd.f32 0.0, %v1055
  %1057 = vmatmul.f32.gmra.mxu0 %v1018
  %v1058 = vpop.f32.mrf.mxu0
  %v1059 = vadd.f32 0.0, %v1058
  %1060 = vdwg.mxu0
  %v1061 = vsel %vm840, %v957, 0
  %v1063 = vsel %vm840, %v958, 0
  %v1065 = vsel %vm840, %v959, 0
  %v1067 = vsel %vm840, %v960, 0
  %v1069 = vsel %vm840, %v961, 0
  %v1071 = vsel %vm840, %v962, 0
  %v1073 = vsel %vm840, %v963, 0
  %v1075 = vsel %vm840, %v964, 0
  %1077 = vmatpush.msra.mxu0 0.0
  %1078 = vmatpush.msra.mxu0 0.0
  %1079 = vmatpush.msra.mxu0 0.0
  %1080 = vmatpush.msra.mxu0 0.0
  %1081 = vmatpush.msra.mxu0 0.0
  %1082 = vmatpush.msra.mxu0 0.0
  %1083 = vmatpush.msra.mxu0 0.0
  %1084 = vmatpush.msra.mxu0 0.0
  %1085 = vmatpush.msra.mxu0 %v972
  %1086 = vmatpush.msra.mxu0 %v971
  %1087 = vmatpush.msra.mxu0 %v970
  %1088 = vmatpush.msra.mxu0 %v969
  %1089 = vmatpush.msra.mxu0 %v968
  %1090 = vmatpush.msra.mxu0 %v967
  %1091 = vmatpush.msra.mxu0 %v966
  %1092 = vmatpush.msra.mxu0 %v965
  %1093 = vmatmul.f32.gmra.mxu0 %v1061
  %v1094 = vpop.f32.mrf.mxu0
  %v1095 = vadd.f32 %v1038, %v1094
  %1096 = vmatmul.f32.gmra.mxu0 %v1063
  %v1097 = vpop.f32.mrf.mxu0
  %v1098 = vadd.f32 %v1041, %v1097
  %1099 = vmatmul.f32.gmra.mxu0 %v1065
  %v1100 = vpop.f32.mrf.mxu0
  %v1101 = vadd.f32 %v1044, %v1100
  %1102 = vmatmul.f32.gmra.mxu0 %v1067
  %v1103 = vpop.f32.mrf.mxu0
  %v1104 = vadd.f32 %v1047, %v1103
  %1105 = vmatmul.f32.gmra.mxu0 %v1069
  %v1106 = vpop.f32.mrf.mxu0
  %v1107 = vadd.f32 %v1050, %v1106
  %1108 = vmatmul.f32.gmra.mxu0 %v1071
  %v1109 = vpop.f32.mrf.mxu0
  %v1110 = vadd.f32 %v1053, %v1109
  %1111 = vmatmul.f32.gmra.mxu0 %v1073
  %v1112 = vpop.f32.mrf.mxu0
  %v1113 = vadd.f32 %v1056, %v1112
  %1114 = vmatmul.f32.gmra.mxu0 %v1075
  %v1115 = vpop.f32.mrf.mxu0
  %v1116 = vadd.f32 %v1059, %v1115
  %1117 = vdwg.mxu0
  %v1118 = vld [vmem:[%s11 + $0x80] sm:$0xff]
  %v1119 = vld [vmem:[%s11 + $0x88] sm:$0xff]
  %v1120 = vld [vmem:[%s11 + $0x90] sm:$0xff]
  %v1121 = vld [vmem:[%s11 + $0x98] sm:$0xff]
  %v1122 = vld [vmem:[%s11 + $0xa0] sm:$0xff]
  %v1123 = vld [vmem:[%s11 + $0xa8] sm:$0xff]
  %v1124 = vld [vmem:[%s11 + $0xb0] sm:$0xff]
  %v1125 = vld [vmem:[%s11 + $0xb8] sm:$0xff]
  %v1126 = vrot.slane %v957, 2
  %v1127 = vrot.slane %v958, 2
  %v1128 = vsel %vm256, %v1126, %v1127
  %v1129 = vrot.slane %v959, 2
  %v1130 = vsel %vm256, %v1127, %v1129
  %v1131 = vrot.slane %v960, 2
  %v1132 = vsel %vm256, %v1129, %v1131
  %v1133 = vrot.slane %v961, 2
  %v1134 = vsel %vm256, %v1131, %v1133
  %v1135 = vrot.slane %v962, 2
  %v1136 = vsel %vm256, %v1133, %v1135
  %v1137 = vrot.slane %v963, 2
  %v1138 = vsel %vm256, %v1135, %v1137
  %v1139 = vrot.slane %v964, 2
  %v1140 = vsel %vm256, %v1137, %v1139
  %v1141 = vsel %vm840, %v1128, 0
  %v1143 = vsel %vm840, %v1130, 0
  %v1145 = vsel %vm840, %v1132, 0
  %v1147 = vsel %vm840, %v1134, 0
  %v1149 = vsel %vm840, %v1136, 0
  %v1151 = vsel %vm840, %v1138, 0
  %v1153 = vsel %vm840, %v1140, 0
  %v1155 = vsel %vm840, %v1139, 0
  %1157 = vmatpush.msra.mxu0 0.0
  %1158 = vmatpush.msra.mxu0 0.0
  %1159 = vmatpush.msra.mxu0 0.0
  %1160 = vmatpush.msra.mxu0 0.0
  %1161 = vmatpush.msra.mxu0 0.0
  %1162 = vmatpush.msra.mxu0 0.0
  %1163 = vmatpush.msra.mxu0 0.0
  %1164 = vmatpush.msra.mxu0 0.0
  %1165 = vmatpush.msra.mxu0 %v1125
  %1166 = vmatpush.msra.mxu0 %v1124
  %1167 = vmatpush.msra.mxu0 %v1123
  %1168 = vmatpush.msra.mxu0 %v1122
  %1169 = vmatpush.msra.mxu0 %v1121
  %1170 = vmatpush.msra.mxu0 %v1120
  %1171 = vmatpush.msra.mxu0 %v1119
  %1172 = vmatpush.msra.mxu0 %v1118
  %1173 = vmatmul.f32.gmra.mxu0 %v1141
  %v1174 = vpop.f32.mrf.mxu0
  %v1175 = vadd.f32 0.0, %v1174
  %1176 = vmatmul.f32.gmra.mxu0 %v1143
  %v1177 = vpop.f32.mrf.mxu0
  %v1178 = vadd.f32 0.0, %v1177
  %1179 = vmatmul.f32.gmra.mxu0 %v1145
  %v1180 = vpop.f32.mrf.mxu0
  %v1181 = vadd.f32 0.0, %v1180
  %1182 = vmatmul.f32.gmra.mxu0 %v1147
  %v1183 = vpop.f32.mrf.mxu0
  %v1184 = vadd.f32 0.0, %v1183
  %1185 = vmatmul.f32.gmra.mxu0 %v1149
  %v1186 = vpop.f32.mrf.mxu0
  %v1187 = vadd.f32 0.0, %v1186
  %1188 = vmatmul.f32.gmra.mxu0 %v1151
  %v1189 = vpop.f32.mrf.mxu0
  %v1190 = vadd.f32 0.0, %v1189
  %1191 = vmatmul.f32.gmra.mxu0 %v1153
  %v1192 = vpop.f32.mrf.mxu0
  %v1193 = vadd.f32 0.0, %v1192
  %1194 = vmatmul.f32.gmra.mxu0 %v1155
  %v1195 = vpop.f32.mrf.mxu0
  %v1196 = vadd.f32 0.0, %v1195
  %1197 = vdwg.mxu0
  %v1198 = vadd.f32 %v1095, %v1175
  %v1199 = vadd.f32 %v1098, %v1178
  %v1200 = vadd.f32 %v1101, %v1181
  %v1201 = vadd.f32 %v1104, %v1184
  %v1202 = vadd.f32 %v1107, %v1187
  %v1203 = vadd.f32 %v1110, %v1190
  %v1204 = vadd.f32 %v1113, %v1193
  %v1205 = vadd.f32 %v1116, %v1196
  %v1206 = vld [vmem:[%s11 + $0xc0] sm:$0xff]
  %v1207 = vld [vmem:[%s11 + $0xc8] sm:$0xff]
  %v1208 = vld [vmem:[%s11 + $0xd0] sm:$0xff]
  %v1209 = vld [vmem:[%s11 + $0xd8] sm:$0xff]
  %v1210 = vld [vmem:[%s11 + $0xe0] sm:$0xff]
  %v1211 = vld [vmem:[%s11 + $0xe8] sm:$0xff]
  %v1212 = vld [vmem:[%s11 + $0xf0] sm:$0xff]
  %v1213 = vld [vmem:[%s11 + $0xf8] sm:$0xff]
  %vm1214 = vcmask 1044480
  %v1215 = vrot.slane %v957, 3
  %v1216 = vrot.slane %v958, 3
  %v1217 = vsel %vm1214, %v1215, %v1216
  %v1218 = vrot.slane %v959, 3
  %v1219 = vsel %vm1214, %v1216, %v1218
  %v1220 = vrot.slane %v960, 3
  %v1221 = vsel %vm1214, %v1218, %v1220
  %v1222 = vrot.slane %v961, 3
  %v1223 = vsel %vm1214, %v1220, %v1222
  %v1224 = vrot.slane %v962, 3
  %v1225 = vsel %vm1214, %v1222, %v1224
  %v1226 = vrot.slane %v963, 3
  %v1227 = vsel %vm1214, %v1224, %v1226
  %v1228 = vrot.slane %v964, 3
  %v1229 = vsel %vm1214, %v1226, %v1228
  %v1230 = vsel %vm840, %v1217, 0
  %v1232 = vsel %vm840, %v1219, 0
  %v1234 = vsel %vm840, %v1221, 0
  %v1236 = vsel %vm840, %v1223, 0
  %v1238 = vsel %vm840, %v1225, 0
  %v1240 = vsel %vm840, %v1227, 0
  %v1242 = vsel %vm840, %v1229, 0
  %v1244 = vsel %vm840, %v1228, 0
  %1246 = vmatpush.msra.mxu0 0.0
  %1247 = vmatpush.msra.mxu0 0.0
  %1248 = vmatpush.msra.mxu0 0.0
  %1249 = vmatpush.msra.mxu0 0.0
  %1250 = vmatpush.msra.mxu0 0.0
  %1251 = vmatpush.msra.mxu0 0.0
  %1252 = vmatpush.msra.mxu0 0.0
  %1253 = vmatpush.msra.mxu0 0.0
  %1254 = vmatpush.msra.mxu0 %v1213
  %1255 = vmatpush.msra.mxu0 %v1212
  %1256 = vmatpush.msra.mxu0 %v1211
  %1257 = vmatpush.msra.mxu0 %v1210
  %1258 = vmatpush.msra.mxu0 %v1209
  %1259 = vmatpush.msra.mxu0 %v1208
  %1260 = vmatpush.msra.mxu0 %v1207
  %1261 = vmatpush.msra.mxu0 %v1206
  %1262 = vmatmul.f32.gmra.mxu0 %v1230
  %v1263 = vpop.f32.mrf.mxu0
  %v1264 = vadd.f32 0.0, %v1263
  %1265 = vmatmul.f32.gmra.mxu0 %v1232
  %v1266 = vpop.f32.mrf.mxu0
  %v1267 = vadd.f32 0.0, %v1266
  %1268 = vmatmul.f32.gmra.mxu0 %v1234
  %v1269 = vpop.f32.mrf.mxu0
  %v1270 = vadd.f32 0.0, %v1269
  %1271 = vmatmul.f32.gmra.mxu0 %v1236
  %v1272 = vpop.f32.mrf.mxu0
  %v1273 = vadd.f32 0.0, %v1272
  %1274 = vmatmul.f32.gmra.mxu0 %v1238
  %v1275 = vpop.f32.mrf.mxu0
  %v1276 = vadd.f32 0.0, %v1275
  %1277 = vmatmul.f32.gmra.mxu0 %v1240
  %v1278 = vpop.f32.mrf.mxu0
  %v1279 = vadd.f32 0.0, %v1278
  %1280 = vmatmul.f32.gmra.mxu0 %v1242
  %v1281 = vpop.f32.mrf.mxu0
  %v1282 = vadd.f32 0.0, %v1281
  %1283 = vmatmul.f32.gmra.mxu0 %v1244
  %v1284 = vpop.f32.mrf.mxu0
  %v1285 = vadd.f32 0.0, %v1284
  %1286 = vdwg.mxu0
  %v1287 = vadd.f32 %v1198, %v1264
  %v1288 = vadd.f32 %v1199, %v1267
  %v1289 = vadd.f32 %v1200, %v1270
  %v1290 = vadd.f32 %v1201, %v1273
  %v1291 = vadd.f32 %v1202, %v1276
  %v1292 = vadd.f32 %v1203, %v1279
  %v1293 = vadd.f32 %v1204, %v1282
  %v1294 = vadd.f32 %v1205, %v1285
  %v1295 = vld [vmem:[%s3] sm:$0xff]
  %v1296 = vld [vmem:[%s3 + $0x8] sm:$0xff]
  %v1297 = vld [vmem:[%s3 + $0x10] sm:$0xff]
  %v1298 = vld [vmem:[%s3 + $0x18] sm:$0xf]
  %vm1299 = vcmask 498688
  %v1301 = vsel %vm1299, %v1295, 0
  %v1304 = vsel %vm1299, %v1296, 0
  %v1307 = vsel %vm1299, %v1297, 0
  %v1310 = vsel %vm1299, %v1298, 0
  %v1313 = vsel %vm1214, %v1294, 0
  %1315 = vmatpush.msra.mxu0 0.0
  %1316 = vmatpush.msra.mxu0 0.0
  %1317 = vmatpush.msra.mxu0 0.0
  %1318 = vmatpush.msra.mxu0 0.0
  %1319 = vmatpush.msra.mxu0 0.0
  %1320 = vmatpush.msra.mxu0 0.0
  %1321 = vmatpush.msra.mxu0 0.0
  %1322 = vmatpush.msra.mxu0 0.0
  %1323 = vmatpush.msra.mxu0 %v1313
  %1324 = vmatpush.msra.mxu0 %v1293
  %1325 = vmatpush.msra.mxu0 %v1292
  %1326 = vmatpush.msra.mxu0 %v1291
  %1327 = vmatpush.msra.mxu0 %v1290
  %1328 = vmatpush.msra.mxu0 %v1289
  %1329 = vmatpush.msra.mxu0 %v1288
  %1330 = vmatpush.msra.mxu0 %v1287
  %1331 = vmatmul.f32.gmra.mxu0 %v1301
  %v1332 = vpop.f32.mrf.mxu0
  %v1333 = vadd.f32 0.0, %v1332
  %1334 = vmatmul.f32.gmra.mxu0 %v1304
  %v1335 = vpop.f32.mrf.mxu0
  %v1336 = vadd.f32 0.0, %v1335
  %1337 = vmatmul.f32.gmra.mxu0 %v1307
  %v1338 = vpop.f32.mrf.mxu0
  %v1339 = vadd.f32 0.0, %v1338
  %1340 = vmatmul.f32.gmra.mxu0 %v1310
  %v1341 = vpop.f32.mrf.mxu0
  %v1342 = vadd.f32 0.0, %v1341
  %1343 = vdwg.mxu0
  %v1344 = vld [vmem:[%s12] sm:$0x1]
  %v1345 = vld [vmem:[%s13] sm:$0x1]
  %v1346 = vsel %vm840, %v1333, 0.0
  %v1347 = vsel %vm840, %v1336, 0.0
  %v1348 = vadd.f32 %v1346, %v1347
  %v1349 = vsel %vm840, %v1339, 0.0
  %v1350 = vadd.f32 %v1348, %v1349
  %vm1351 = vcmask 519168
  %v1352 = vsel %vm1351, %v1342, 0.0
  %v1353 = vadd.f32 %v1350, %v1352
  %v1354 = vrot.slane %v1353, 4
  %v1355 = vadd.f32 %v1353, %v1354
  %v1356 = vrot.slane %v1355, 2
  %v1357 = vadd.f32 %v1355, %v1356
  %v1358 = vrot.slane %v1357, 1
  %v1359 = vadd.f32 %v1357, %v1358
  %v1360 = vmul.f32 %v1359, 0.035714287
  %v1361 = vsub.f32 %v1333, %v1360
  %v1362 = vsub.f32 %v1336, %v1360
  %v1363 = vsub.f32 %v1339, %v1360
  %v1364 = vsub.f32 %v1342, %v1360
  %v1365 = vmul.f32 %v1361, %v1361
  %v1366 = vmul.f32 %v1362, %v1362
  %v1367 = vmul.f32 %v1363, %v1363
  %v1368 = vmul.f32 %v1364, %v1364
  %v1369 = vsel %vm840, %v1365, 0.0
  %v1370 = vsel %vm840, %v1366, 0.0
  %v1371 = vadd.f32 %v1369, %v1370
  %v1372 = vsel %vm840, %v1367, 0.0
  %v1373 = vadd.f32 %v1371, %v1372
  %v1374 = vsel %vm1351, %v1368, 0.0
  %v1375 = vadd.f32 %v1373, %v1374
  %v1376 = vrot.slane %v1375, 4
  %v1377 = vadd.f32 %v1375, %v1376
  %v1378 = vrot.slane %v1377, 2
  %v1379 = vadd.f32 %v1377, %v1378
  %v1380 = vrot.slane %v1379, 1
  %v1381 = vadd.f32 %v1379, %v1380
  %v1382 = vmul.f32 %v1381, 0.035714287
  %v1383 = vadd.f32 %v1382, 1e-05
  %v1384 = vrsqrt.pop %v1383
  %v1385 = vmul.f32 %v1384, %v1383
  %v1386 = vmul.f32 %v1385, %v1384
  %v1387 = vmul.f32 0.5, %v1386
  %v1388 = vsub.f32 1.5, %v1387
  %v1389 = vmul.f32 %v1384, %v1388
  %vm1390 = vweird.f32 %v1383
  %vm1391 = vweird.f32 %v1384
  %vm1392 = vmor %vm1390, %vm1391
  %v1393 = vsel %vm1392, %v1384, %v1389
  %v1394 = vmul.f32 %v1393, %v1344
  %v1395 = vperm.slane %v1394, 0
  %v1396 = vmul.f32 %v1361, %v1395
  %v1397 = vmul.f32 %v1362, %v1395
  %v1398 = vmul.f32 %v1363, %v1395
  %v1399 = vmul.f32 %v1364, %v1395
  %v1401 = vperm.slane %v1345, 0
  %v1403 = vadd.f32 %v1396, %v1401
  %v1404 = vadd.f32 %v1397, %v1401
  %v1405 = vadd.f32 %v1398, %v1401
  %v1406 = vadd.f32 %v1399, %v1401
  %vm1407 = vcmp.ge.f32.partialorder %v1403, 0.0
  %vm1408 = vcmp.ge.f32.partialorder %v1404, 0.0
  %vm1409 = vcmp.ge.f32.partialorder %v1405, 0.0
  %vm1410 = vcmp.ge.f32.partialorder %v1406, 0.0
  %v1411 = vmul.f32 %v1403, 0.2
  %v1412 = vmul.f32 %v1404, 0.2
  %v1413 = vmul.f32 %v1405, 0.2
  %v1414 = vmul.f32 %v1406, 0.2
  %v1415 = vsel %vm1407, %v1403, %v1411
  %v1416 = vsel %vm1408, %v1404, %v1412
  %v1417 = vsel %vm1409, %v1405, %v1413
  %v1418 = vsel %vm1410, %v1406, %v1414
  %v1419 = vld [vmem:[%s14] sm:$0xff]
  %v1420 = vld [vmem:[%s14 + $0x8] sm:$0xff]
  %v1421 = vld [vmem:[%s14 + $0x10] sm:$0xff]
  %v1422 = vld [vmem:[%s14 + $0x18] sm:$0xff]
  %v1423 = vld [vmem:[%s14 + $0x20] sm:$0xff]
  %v1424 = vld [vmem:[%s14 + $0x28] sm:$0xff]
  %v1425 = vld [vmem:[%s14 + $0x30] sm:$0xff]
  %v1426 = vld [vmem:[%s14 + $0x38] sm:$0xff]
  %v1427 = vld [vmem:[%s14 + $0x40] sm:$0xff]
  %v1428 = vld [vmem:[%s14 + $0x48] sm:$0xff]
  %v1429 = vld [vmem:[%s14 + $0x50] sm:$0xff]
  %v1430 = vld [vmem:[%s14 + $0x58] sm:$0xff]
  %v1431 = vld [vmem:[%s14 + $0x60] sm:$0xff]
  %v1432 = vld [vmem:[%s14 + $0x68] sm:$0xff]
  %v1433 = vld [vmem:[%s14 + $0x70] sm:$0xff]
  %v1434 = vld [vmem:[%s14 + $0x78] sm:$0xff]
  %v1439 = vrot.slane %v1415, 1
  %v1440 = vrot.slane %v1416, 1
  %v1441 = vsel %vm111, %v1439, %v1440
  %v1442 = vrot.slane %v1417, 1
  %v1443 = vsel %vm111, %v1440, %v1442
  %v1444 = vrot.slane %v1418, 1
  %v1445 = vsel %vm111, %v1442, %v1444
  %v1446 = vsel %vm840, %v1441, 0
  %v1448 = vsel %vm840, %v1443, 0
  %v1450 = vsel %vm840, %v1445, 0
  %v1452 = vsel %vm840, %v1444, 0
  %1454 = vmatpush.msra.mxu0 0.0
  %1455 = vmatpush.msra.mxu0 0.0
  %1456 = vmatpush.msra.mxu0 0.0
  %1457 = vmatpush.msra.mxu0 0.0
  %1458 = vmatpush.msra.mxu0 0.0
  %1459 = vmatpush.msra.mxu0 0.0
  %1460 = vmatpush.msra.mxu0 0.0
  %1461 = vmatpush.msra.mxu0 0.0
  %1462 = vmatpush.msra.mxu0 %v1434
  %1463 = vmatpush.msra.mxu0 %v1433
  %1464 = vmatpush.msra.mxu0 %v1432
  %1465 = vmatpush.msra.mxu0 %v1431
  %1466 = vmatpush.msra.mxu0 %v1430
  %1467 = vmatpush.msra.mxu0 %v1429
  %1468 = vmatpush.msra.mxu0 %v1428
  %1469 = vmatpush.msra.mxu0 %v1427
  %1470 = vmatmul.f32.gmra.mxu0 %v1446
  %v1471 = vpop.f32.mrf.mxu0
  %v1472 = vadd.f32 0.0, %v1471
  %1473 = vmatmul.f32.gmra.mxu0 %v1448
  %v1474 = vpop.f32.mrf.mxu0
  %v1475 = vadd.f32 0.0, %v1474
  %1476 = vmatmul.f32.gmra.mxu0 %v1450
  %v1477 = vpop.f32.mrf.mxu0
  %v1478 = vadd.f32 0.0, %v1477
  %1479 = vmatmul.f32.gmra.mxu0 %v1452
  %v1480 = vpop.f32.mrf.mxu0
  %v1481 = vadd.f32 0.0, %v1480
  %1482 = vdwg.mxu0
  %v1483 = vsel %vm840, %v1415, 0
  %v1485 = vsel %vm840, %v1416, 0
  %v1487 = vsel %vm840, %v1417, 0
  %v1489 = vsel %vm840, %v1418, 0
  %1491 = vmatpush.msra.mxu0 0.0
  %1492 = vmatpush.msra.mxu0 0.0
  %1493 = vmatpush.msra.mxu0 0.0
  %1494 = vmatpush.msra.mxu0 0.0
  %1495 = vmatpush.msra.mxu0 0.0
  %1496 = vmatpush.msra.mxu0 0.0
  %1497 = vmatpush.msra.mxu0 0.0
  %1498 = vmatpush.msra.mxu0 0.0
  %1499 = vmatpush.msra.mxu0 %v1426
  %1500 = vmatpush.msra.mxu0 %v1425
  %1501 = vmatpush.msra.mxu0 %v1424
  %1502 = vmatpush.msra.mxu0 %v1423
  %1503 = vmatpush.msra.mxu0 %v1422
  %1504 = vmatpush.msra.mxu0 %v1421
  %1505 = vmatpush.msra.mxu0 %v1420
  %1506 = vmatpush.msra.mxu0 %v1419
  %1507 = vmatmul.f32.gmra.mxu0 %v1483
  %v1508 = vpop.f32.mrf.mxu0
  %v1509 = vadd.f32 %v1472, %v1508
  %1510 = vmatmul.f32.gmra.mxu0 %v1485
  %v1511 = vpop.f32.mrf.mxu0
  %v1512 = vadd.f32 %v1475, %v1511
  %1513 = vmatmul.f32.gmra.mxu0 %v1487
  %v1514 = vpop.f32.mrf.mxu0
  %v1515 = vadd.f32 %v1478, %v1514
  %1516 = vmatmul.f32.gmra.mxu0 %v1489
  %v1517 = vpop.f32.mrf.mxu0
  %v1518 = vadd.f32 %v1481, %v1517
  %1519 = vdwg.mxu0
  %v1520 = vld [vmem:[%s14 + $0x80] sm:$0xff]
  %v1521 = vld [vmem:[%s14 + $0x88] sm:$0xff]
  %v1522 = vld [vmem:[%s14 + $0x90] sm:$0xff]
  %v1523 = vld [vmem:[%s14 + $0x98] sm:$0xff]
  %v1524 = vld [vmem:[%s14 + $0xa0] sm:$0xff]
  %v1525 = vld [vmem:[%s14 + $0xa8] sm:$0xff]
  %v1526 = vld [vmem:[%s14 + $0xb0] sm:$0xff]
  %v1527 = vld [vmem:[%s14 + $0xb8] sm:$0xff]
  %v1528 = vrot.slane %v1415, 2
  %v1529 = vrot.slane %v1416, 2
  %v1530 = vsel %vm256, %v1528, %v1529
  %v1531 = vrot.slane %v1417, 2
  %v1532 = vsel %vm256, %v1529, %v1531
  %v1533 = vrot.slane %v1418, 2
  %v1534 = vsel %vm256, %v1531, %v1533
  %v1535 = vsel %vm840, %v1530, 0
  %v1537 = vsel %vm840, %v1532, 0
  %v1539 = vsel %vm840, %v1534, 0
  %v1541 = vsel %vm840, %v1533, 0
  %1543 = vmatpush.msra.mxu0 0.0
  %1544 = vmatpush.msra.mxu0 0.0
  %1545 = vmatpush.msra.mxu0 0.0
  %1546 = vmatpush.msra.mxu0 0.0
  %1547 = vmatpush.msra.mxu0 0.0
  %1548 = vmatpush.msra.mxu0 0.0
  %1549 = vmatpush.msra.mxu0 0.0
  %1550 = vmatpush.msra.mxu0 0.0
  %1551 = vmatpush.msra.mxu0 %v1527
  %1552 = vmatpush.msra.mxu0 %v1526
  %1553 = vmatpush.msra.mxu0 %v1525
  %1554 = vmatpush.msra.mxu0 %v1524
  %1555 = vmatpush.msra.mxu0 %v1523
  %1556 = vmatpush.msra.mxu0 %v1522
  %1557 = vmatpush.msra.mxu0 %v1521
  %1558 = vmatpush.msra.mxu0 %v1520
  %1559 = vmatmul.f32.gmra.mxu0 %v1535
  %v1560 = vpop.f32.mrf.mxu0
  %v1561 = vadd.f32 0.0, %v1560
  %1562 = vmatmul.f32.gmra.mxu0 %v1537
  %v1563 = vpop.f32.mrf.mxu0
  %v1564 = vadd.f32 0.0, %v1563
  %1565 = vmatmul.f32.gmra.mxu0 %v1539
  %v1566 = vpop.f32.mrf.mxu0
  %v1567 = vadd.f32 0.0, %v1566
  %1568 = vmatmul.f32.gmra.mxu0 %v1541
  %v1569 = vpop.f32.mrf.mxu0
  %v1570 = vadd.f32 0.0, %v1569
  %1571 = vdwg.mxu0
  %v1572 = vadd.f32 %v1509, %v1561
  %v1573 = vadd.f32 %v1512, %v1564
  %v1574 = vadd.f32 %v1515, %v1567
  %v1575 = vadd.f32 %v1518, %v1570
  %v1576 = vld [vmem:[%s15] sm:$0x1]
  %v1578 = vperm.slane %v1576, 0
  %v1580 = vadd.f32 %v1572, %v1578
  %v1581 = vadd.f32 %v1573, %v1578
  %v1582 = vadd.f32 %v1574, %v1578
  %v1583 = vadd.f32 %v1575, %v1578
  %v1584 = vld [vmem:[%s16] sm:$0xff]
  %v1585 = vld [vmem:[%s16 + $0x8] sm:$0xff]
  %v1586 = vld [vmem:[%s16 + $0x10] sm:$0xff]
  %v1587 = vld [vmem:[%s16 + $0x18] sm:$0xff]
  %v1588 = vld [vmem:[%s16 + $0x20] sm:$0xff]
  %v1589 = vld [vmem:[%s16 + $0x28] sm:$0xff]
  %v1590 = vld [vmem:[%s16 + $0x30] sm:$0xff]
  %v1591 = vld [vmem:[%s16 + $0x38] sm:$0xff]
  %v1594 = vrot.slane %v1580, 1
  %v1595 = vrot.slane %v1581, 1
  %v1596 = vsel %vm111, %v1594, %v1595
  %v1597 = vsel %vm410, %v1596, 0
  %v1599 = vsel %vm410, %v1595, 0
  %1601 = vmatpush.msra.mxu0 0.0
  %1602 = vmatpush.msra.mxu0 0.0
  %1603 = vmatpush.msra.mxu0 0.0
  %1604 = vmatpush.msra.mxu0 0.0
  %1605 = vmatpush.msra.mxu0 0.0
  %1606 = vmatpush.msra.mxu0 0.0
  %1607 = vmatpush.msra.mxu0 0.0
  %1608 = vmatpush.msra.mxu0 0.0
  %1609 = vmatpush.msra.mxu0 0.0
  %1610 = vmatpush.msra.mxu0 0.0
  %1611 = vmatpush.msra.mxu0 0.0
  %1612 = vmatpush.msra.mxu0 0.0
  %1613 = vmatpush.msra.mxu0 %v1591
  %1614 = vmatpush.msra.mxu0 %v1590
  %1615 = vmatpush.msra.mxu0 %v1589
  %1616 = vmatpush.msra.mxu0 %v1588
  %1617 = vmatmul.f32.gmra.mxu0 %v1597
  %v1618 = vpop.f32.mrf.mxu0
  %v1619 = vadd.f32 0.0, %v1618
  %1620 = vmatmul.f32.gmra.mxu0 %v1599
  %v1621 = vpop.f32.mrf.mxu0
  %v1622 = vadd.f32 0.0, %v1621
  %1623 = vdwg.mxu0
  %v1624 = vsel %vm410, %v1580, 0
  %v1626 = vsel %vm410, %v1581, 0
  %1628 = vmatpush.msra.mxu0 0.0
  %1629 = vmatpush.msra.mxu0 0.0
  %1630 = vmatpush.msra.mxu0 0.0
  %1631 = vmatpush.msra.mxu0 0.0
  %1632 = vmatpush.msra.mxu0 0.0
  %1633 = vmatpush.msra.mxu0 0.0
  %1634 = vmatpush.msra.mxu0 0.0
  %1635 = vmatpush.msra.mxu0 0.0
  %1636 = vmatpush.msra.mxu0 0.0
  %1637 = vmatpush.msra.mxu0 0.0
  %1638 = vmatpush.msra.mxu0 0.0
  %1639 = vmatpush.msra.mxu0 0.0
  %1640 = vmatpush.msra.mxu0 %v1587
  %1641 = vmatpush.msra.mxu0 %v1586
  %1642 = vmatpush.msra.mxu0 %v1585
  %1643 = vmatpush.msra.mxu0 %v1584
  %1644 = vmatmul.f32.gmra.mxu0 %v1624
  %v1645 = vpop.f32.mrf.mxu0
  %v1646 = vadd.f32 %v1619, %v1645
  %1647 = vmatmul.f32.gmra.mxu0 %v1626
  %v1648 = vpop.f32.mrf.mxu0
  %v1649 = vadd.f32 %v1622, %v1648
  %1650 = vdwg.mxu0
  %v1651 = vld [vmem:[%s16 + $0x40] sm:$0xff]
  %v1652 = vld [vmem:[%s16 + $0x48] sm:$0xff]
  %v1653 = vld [vmem:[%s16 + $0x50] sm:$0xff]
  %v1654 = vld [vmem:[%s16 + $0x58] sm:$0xff]
  %v1656 = vrot.slane %v1580, 2
  %v1657 = vrot.slane %v1581, 2
  %v1658 = vsel %vm256, %v1656, %v1657
  %v1659 = vrot.slane %v1582, 2
  %v1660 = vsel %vm256, %v1657, %v1659
  %v1661 = vsel %vm410, %v1658, 0
  %v1663 = vsel %vm410, %v1660, 0
  %1665 = vmatpush.msra.mxu0 0.0
  %1666 = vmatpush.msra.mxu0 0.0
  %1667 = vmatpush.msra.mxu0 0.0
  %1668 = vmatpush.msra.mxu0 0.0
  %1669 = vmatpush.msra.mxu0 0.0
  %1670 = vmatpush.msra.mxu0 0.0
  %1671 = vmatpush.msra.mxu0 0.0
  %1672 = vmatpush.msra.mxu0 0.0
  %1673 = vmatpush.msra.mxu0 0.0
  %1674 = vmatpush.msra.mxu0 0.0
  %1675 = vmatpush.msra.mxu0 0.0
  %1676 = vmatpush.msra.mxu0 0.0
  %1677 = vmatpush.msra.mxu0 %v1654
  %1678 = vmatpush.msra.mxu0 %v1653
  %1679 = vmatpush.msra.mxu0 %v1652
  %1680 = vmatpush.msra.mxu0 %v1651
  %1681 = vmatmul.f32.gmra.mxu0 %v1661
  %v1682 = vpop.f32.mrf.mxu0
  %v1683 = vadd.f32 0.0, %v1682
  %1684 = vmatmul.f32.gmra.mxu0 %v1663
  %v1685 = vpop.f32.mrf.mxu0
  %v1686 = vadd.f32 0.0, %v1685
  %1687 = vdwg.mxu0
  %v1688 = vadd.f32 %v1646, %v1683
  %v1689 = vadd.f32 %v1649, %v1686
  %v1690 = vld [vmem:[%s16 + $0x60] sm:$0xff]
  %v1691 = vld [vmem:[%s16 + $0x68] sm:$0xff]
  %v1692 = vld [vmem:[%s16 + $0x70] sm:$0xff]
  %v1693 = vld [vmem:[%s16 + $0x78] sm:$0xff]
  %v1694 = vrot.slane %v1580, 3
  %v1695 = vrot.slane %v1581, 3
  %v1696 = vsel %vm1214, %v1694, %v1695
  %v1697 = vrot.slane %v1582, 3
  %v1698 = vsel %vm1214, %v1695, %v1697
  %v1699 = vsel %vm410, %v1696, 0
  %v1701 = vsel %vm410, %v1698, 0
  %1703 = vmatpush.msra.mxu0 0.0
  %1704 = vmatpush.msra.mxu0 0.0
  %1705 = vmatpush.msra.mxu0 0.0
  %1706 = vmatpush.msra.mxu0 0.0
  %1707 = vmatpush.msra.mxu0 0.0
  %1708 = vmatpush.msra.mxu0 0.0
  %1709 = vmatpush.msra.mxu0 0.0
  %1710 = vmatpush.msra.mxu0 0.0
  %1711 = vmatpush.msra.mxu0 0.0
  %1712 = vmatpush.msra.mxu0 0.0
  %1713 = vmatpush.msra.mxu0 0.0
  %1714 = vmatpush.msra.mxu0 0.0
  %1715 = vmatpush.msra.mxu0 %v1693
  %1716 = vmatpush.msra.mxu0 %v1692
  %1717 = vmatpush.msra.mxu0 %v1691
  %1718 = vmatpush.msra.mxu0 %v1690
  %1719 = vmatmul.f32.gmra.mxu0 %v1699
  %v1720 = vpop.f32.mrf.mxu0
  %v1721 = vadd.f32 0.0, %v1720
  %1722 = vmatmul.f32.gmra.mxu0 %v1701
  %v1723 = vpop.f32.mrf.mxu0
  %v1724 = vadd.f32 0.0, %v1723
  %1725 = vdwg.mxu0
  %v1726 = vadd.f32 %v1688, %v1721
  %v1727 = vadd.f32 %v1689, %v1724
  %v1728 = vld [vmem:[%s16 + $0x80] sm:$0xff]
  %v1729 = vld [vmem:[%s16 + $0x88] sm:$0xff]
  %v1730 = vld [vmem:[%s16 + $0x90] sm:$0xff]
  %v1731 = vld [vmem:[%s16 + $0x98] sm:$0xff]
  %vm1732 = vcmask 1043456
  %v1733 = vrot.slane %v1580, 4
  %v1734 = vrot.slane %v1581, 4
  %v1735 = vsel %vm1732, %v1733, %v1734
  %v1736 = vrot.slane %v1582, 4
  %v1737 = vsel %vm1732, %v1734, %v1736
  %v1738 = vsel %vm410, %v1735, 0
  %v1740 = vsel %vm410, %v1737, 0
  %1742 = vmatpush.msra.mxu0 0.0
  %1743 = vmatpush.msra.mxu0 0.0
  %1744 = vmatpush.msra.mxu0 0.0
  %1745 = vmatpush.msra.mxu0 0.0
  %1746 = vmatpush.msra.mxu0 0.0
  %1747 = vmatpush.msra.mxu0 0.0
  %1748 = vmatpush.msra.mxu0 0.0
  %1749 = vmatpush.msra.mxu0 0.0
  %1750 = vmatpush.msra.mxu0 0.0
  %1751 = vmatpush.msra.mxu0 0.0
  %1752 = vmatpush.msra.mxu0 0.0
  %1753 = vmatpush.msra.mxu0 0.0
  %1754 = vmatpush.msra.mxu0 %v1731
  %1755 = vmatpush.msra.mxu0 %v1730
  %1756 = vmatpush.msra.mxu0 %v1729
  %1757 = vmatpush.msra.mxu0 %v1728
  %1758 = vmatmul.f32.gmra.mxu0 %v1738
  %v1759 = vpop.f32.mrf.mxu0
  %v1760 = vadd.f32 0.0, %v1759
  %1761 = vmatmul.f32.gmra.mxu0 %v1740
  %v1762 = vpop.f32.mrf.mxu0
  %v1763 = vadd.f32 0.0, %v1762
  %1764 = vdwg.mxu0
  %v1765 = vadd.f32 %v1726, %v1760
  %v1766 = vadd.f32 %v1727, %v1763
  %v1767 = vld [vmem:[%s16 + $0xa0] sm:$0xff]
  %v1768 = vld [vmem:[%s16 + $0xa8] sm:$0xff]
  %v1769 = vld [vmem:[%s16 + $0xb0] sm:$0xff]
  %v1770 = vld [vmem:[%s16 + $0xb8] sm:$0xff]
  %vm1771 = vcmask 1042432
  %v1772 = vrot.slane %v1580, 5
  %v1773 = vrot.slane %v1581, 5
  %v1774 = vsel %vm1771, %v1772, %v1773
  %v1775 = vrot.slane %v1582, 5
  %v1776 = vsel %vm1771, %v1773, %v1775
  %v1777 = vsel %vm410, %v1774, 0
  %v1779 = vsel %vm410, %v1776, 0
  %1781 = vmatpush.msra.mxu0 0.0
  %1782 = vmatpush.msra.mxu0 0.0
  %1783 = vmatpush.msra.mxu0 0.0
  %1784 = vmatpush.msra.mxu0 0.0
  %1785 = vmatpush.msra.mxu0 0.0
  %1786 = vmatpush.msra.mxu0 0.0
  %1787 = vmatpush.msra.mxu0 0.0
  %1788 = vmatpush.msra.mxu0 0.0
  %1789 = vmatpush.msra.mxu0 0.0
  %1790 = vmatpush.msra.mxu0 0.0
  %1791 = vmatpush.msra.mxu0 0.0
  %1792 = vmatpush.msra.mxu0 0.0
  %1793 = vmatpush.msra.mxu0 %v1770
  %1794 = vmatpush.msra.mxu0 %v1769
  %1795 = vmatpush.msra.mxu0 %v1768
  %1796 = vmatpush.msra.mxu0 %v1767
  %1797 = vmatmul.f32.gmra.mxu0 %v1777
  %v1798 = vpop.f32.mrf.mxu0
  %v1799 = vadd.f32 0.0, %v1798
  %1800 = vmatmul.f32.gmra.mxu0 %v1779
  %v1801 = vpop.f32.mrf.mxu0
  %v1802 = vadd.f32 0.0, %v1801
  %1803 = vdwg.mxu0
  %v1804 = vadd.f32 %v1765, %v1799
  %v1805 = vadd.f32 %v1766, %v1802
  %v1806 = vld [vmem:[%s16 + $0xc0] sm:$0xff]
  %v1807 = vld [vmem:[%s16 + $0xc8] sm:$0xff]
  %v1808 = vld [vmem:[%s16 + $0xd0] sm:$0xff]
  %v1809 = vld [vmem:[%s16 + $0xd8] sm:$0xff]
  %vm1810 = vcmask 1041408
  %v1811 = vrot.slane %v1580, 6
  %v1812 = vrot.slane %v1581, 6
  %v1813 = vsel %vm1810, %v1811, %v1812
  %v1814 = vrot.slane %v1582, 6
  %v1815 = vsel %vm1810, %v1812, %v1814
  %v1816 = vsel %vm410, %v1813, 0
  %v1818 = vsel %vm410, %v1815, 0
  %1820 = vmatpush.msra.mxu0 0.0
  %1821 = vmatpush.msra.mxu0 0.0
  %1822 = vmatpush.msra.mxu0 0.0
  %1823 = vmatpush.msra.mxu0 0.0
  %1824 = vmatpush.msra.mxu0 0.0
  %1825 = vmatpush.msra.mxu0 0.0
  %1826 = vmatpush.msra.mxu0 0.0
  %1827 = vmatpush.msra.mxu0 0.0
  %1828 = vmatpush.msra.mxu0 0.0
  %1829 = vmatpush.msra.mxu0 0.0
  %1830 = vmatpush.msra.mxu0 0.0
  %1831 = vmatpush.msra.mxu0 0.0
  %1832 = vmatpush.msra.mxu0 %v1809
  %1833 = vmatpush.msra.mxu0 %v1808
  %1834 = vmatpush.msra.mxu0 %v1807
  %1835 = vmatpush.msra.mxu0 %v1806
  %1836 = vmatmul.f32.gmra.mxu0 %v1816
  %v1837 = vpop.f32.mrf.mxu0
  %v1838 = vadd.f32 0.0, %v1837
  %1839 = vmatmul.f32.gmra.mxu0 %v1818
  %v1840 = vpop.f32.mrf.mxu0
  %v1841 = vadd.f32 0.0, %v1840
  %1842 = vdwg.mxu0
  %v1843 = vadd.f32 %v1804, %v1838
  %v1844 = vadd.f32 %v1805, %v1841
  %v1845 = vld [vmem:[%s16 + $0xe0] sm:$0xff]
  %v1846 = vld [vmem:[%s16 + $0xe8] sm:$0xff]
  %v1847 = vld [vmem:[%s16 + $0xf0] sm:$0xff]
  %v1848 = vld [vmem:[%s16 + $0xf8] sm:$0xff]
  %vm1849 = vcmask 1040384
  %v1850 = vrot.slane %v1580, 7
  %v1851 = vrot.slane %v1581, 7
  %v1852 = vsel %vm1849, %v1850, %v1851
  %v1853 = vrot.slane %v1582, 7
  %v1854 = vsel %vm1849, %v1851, %v1853
  %v1855 = vsel %vm410, %v1852, 0
  %v1857 = vsel %vm410, %v1854, 0
  %1859 = vmatpush.msra.mxu0 0.0
  %1860 = vmatpush.msra.mxu0 0.0
  %1861 = vmatpush.msra.mxu0 0.0
  %1862 = vmatpush.msra.mxu0 0.0
  %1863 = vmatpush.msra.mxu0 0.0
  %1864 = vmatpush.msra.mxu0 0.0
  %1865 = vmatpush.msra.mxu0 0.0
  %1866 = vmatpush.msra.mxu0 0.0
  %1867 = vmatpush.msra.mxu0 0.0
  %1868 = vmatpush.msra.mxu0 0.0
  %1869 = vmatpush.msra.mxu0 0.0
  %1870 = vmatpush.msra.mxu0 0.0
  %1871 = vmatpush.msra.mxu0 %v1848
  %1872 = vmatpush.msra.mxu0 %v1847
  %1873 = vmatpush.msra.mxu0 %v1846
  %1874 = vmatpush.msra.mxu0 %v1845
  %1875 = vmatmul.f32.gmra.mxu0 %v1855
  %v1876 = vpop.f32.mrf.mxu0
  %v1877 = vadd.f32 0.0, %v1876
  %1878 = vmatmul.f32.gmra.mxu0 %v1857
  %v1879 = vpop.f32.mrf.mxu0
  %v1880 = vadd.f32 0.0, %v1879
  %1881 = vdwg.mxu0
  %v1882 = vadd.f32 %v1843, %v1877
  %v1883 = vadd.f32 %v1844, %v1880
  %v1884 = vld [vmem:[%s16 + $0x100] sm:$0xff]
  %v1885 = vld [vmem:[%s16 + $0x108] sm:$0xff]
  %v1886 = vld [vmem:[%s16 + $0x110] sm:$0xff]
  %v1887 = vld [vmem:[%s16 + $0x118] sm:$0xff]
  %v1888 = vsel %vm410, %v1582, 0
  %1890 = vmatpush.msra.mxu0 0.0
  %1891 = vmatpush.msra.mxu0 0.0
  %1892 = vmatpush.msra.mxu0 0.0
  %1893 = vmatpush.msra.mxu0 0.0
  %1894 = vmatpush.msra.mxu0 0.0
  %1895 = vmatpush.msra.mxu0 0.0
  %1896 = vmatpush.msra.mxu0 0.0
  %1897 = vmatpush.msra.mxu0 0.0
  %1898 = vmatpush.msra.mxu0 0.0
  %1899 = vmatpush.msra.mxu0 0.0
  %1900 = vmatpush.msra.mxu0 0.0
  %1901 = vmatpush.msra.mxu0 0.0
  %1902 = vmatpush.msra.mxu0 %v1887
  %1903 = vmatpush.msra.mxu0 %v1886
  %1904 = vmatpush.msra.mxu0 %v1885
  %1905 = vmatpush.msra.mxu0 %v1884
  %1906 = vmatmul.f32.gmra.mxu0 %v1626
  %v1907 = vpop.f32.mrf.mxu0
  %v1908 = vadd.f32 0.0, %v1907
  %1909 = vmatmul.f32.gmra.mxu0 %v1888
  %v1910 = vpop.f32.mrf.mxu0
  %v1911 = vadd.f32 0.0, %v1910
  %1912 = vdwg.mxu0
  %v1913 = vadd.f32 %v1882, %v1908
  %v1914 = vadd.f32 %v1883, %v1911
  %v1915 = vld [vmem:[%s16 + $0x120] sm:$0xff]
  %v1916 = vld [vmem:[%s16 + $0x128] sm:$0xff]
  %v1917 = vld [vmem:[%s16 + $0x130] sm:$0xff]
  %v1918 = vld [vmem:[%s16 + $0x138] sm:$0xff]
  %v1919 = vrot.slane %v1582, 1
  %v1920 = vsel %vm111, %v1595, %v1919
  %v1921 = vsel %vm410, %v1920, 0
  %v1923 = vsel %vm410, %v1919, 0
  %1925 = vmatpush.msra.mxu0 0.0
  %1926 = vmatpush.msra.mxu0 0.0
  %1927 = vmatpush.msra.mxu0 0.0
  %1928 = vmatpush.msra.mxu0 0.0
  %1929 = vmatpush.msra.mxu0 0.0
  %1930 = vmatpush.msra.mxu0 0.0
  %1931 = vmatpush.msra.mxu0 0.0
  %1932 = vmatpush.msra.mxu0 0.0
  %1933 = vmatpush.msra.mxu0 0.0
  %1934 = vmatpush.msra.mxu0 0.0
  %1935 = vmatpush.msra.mxu0 0.0
  %1936 = vmatpush.msra.mxu0 0.0
  %1937 = vmatpush.msra.mxu0 %v1918
  %1938 = vmatpush.msra.mxu0 %v1917
  %1939 = vmatpush.msra.mxu0 %v1916
  %1940 = vmatpush.msra.mxu0 %v1915
  %1941 = vmatmul.f32.gmra.mxu0 %v1921
  %v1942 = vpop.f32.mrf.mxu0
  %v1943 = vadd.f32 0.0, %v1942
  %1944 = vmatmul.f32.gmra.mxu0 %v1923
  %v1945 = vpop.f32.mrf.mxu0
  %v1946 = vadd.f32 0.0, %v1945
  %1947 = vdwg.mxu0
  %v1948 = vadd.f32 %v1913, %v1943
  %v1949 = vadd.f32 %v1914, %v1946
  %v1950 = vld [vmem:[%s16 + $0x140] sm:$0xff]
  %v1951 = vld [vmem:[%s16 + $0x148] sm:$0xff]
  %v1952 = vld [vmem:[%s16 + $0x150] sm:$0xff]
  %v1953 = vld [vmem:[%s16 + $0x158] sm:$0xff]
  %v1955 = vrot.slane %v1583, 2
  %v1956 = vsel %vm256, %v1659, %v1955
  %v1957 = vsel %vm410, %v1956, 0
  %1959 = vmatpush.msra.mxu0 0.0
  %1960 = vmatpush.msra.mxu0 0.0
  %1961 = vmatpush.msra.mxu0 0.0
  %1962 = vmatpush.msra.mxu0 0.0
  %1963 = vmatpush.msra.mxu0 0.0
  %1964 = vmatpush.msra.mxu0 0.0
  %1965 = vmatpush.msra.mxu0 0.0
  %1966 = vmatpush.msra.mxu0 0.0
  %1967 = vmatpush.msra.mxu0 0.0
  %1968 = vmatpush.msra.mxu0 0.0
  %1969 = vmatpush.msra.mxu0 0.0
  %1970 = vmatpush.msra.mxu0 0.0
  %1971 = vmatpush.msra.mxu0 %v1953
  %1972 = vmatpush.msra.mxu0 %v1952
  %1973 = vmatpush.msra.mxu0 %v1951
  %1974 = vmatpush.msra.mxu0 %v1950
  %1975 = vmatmul.f32.gmra.mxu0 %v1663
  %v1976 = vpop.f32.mrf.mxu0
  %v1977 = vadd.f32 0.0, %v1976
  %1978 = vmatmul.f32.gmra.mxu0 %v1957
  %v1979 = vpop.f32.mrf.mxu0
  %v1980 = vadd.f32 0.0, %v1979
  %1981 = vdwg.mxu0
  %v1982 = vadd.f32 %v1948, %v1977
  %v1983 = vadd.f32 %v1949, %v1980
  %v1984 = vld [vmem:[%s16 + $0x160] sm:$0xff]
  %v1985 = vld [vmem:[%s16 + $0x168] sm:$0xff]
  %v1986 = vld [vmem:[%s16 + $0x170] sm:$0xff]
  %v1987 = vld [vmem:[%s16 + $0x178] sm:$0xff]
  %v1988 = vrot.slane %v1583, 3
  %v1989 = vsel %vm1214, %v1697, %v1988
  %v1990 = vsel %vm410, %v1989, 0
  %1992 = vmatpush.msra.mxu0 0.0
  %1993 = vmatpush.msra.mxu0 0.0
  %1994 = vmatpush.msra.mxu0 0.0
  %1995 = vmatpush.msra.mxu0 0.0
  %1996 = vmatpush.msra.mxu0 0.0
  %1997 = vmatpush.msra.mxu0 0.0
  %1998 = vmatpush.msra.mxu0 0.0
  %1999 = vmatpush.msra.mxu0 0.0
  %2000 = vmatpush.msra.mxu0 0.0
  %2001 = vmatpush.msra.mxu0 0.0
  %2002 = vmatpush.msra.mxu0 0.0
  %2003 = vmatpush.msra.mxu0 0.0
  %2004 = vmatpush.msra.mxu0 %v1987
  %2005 = vmatpush.msra.mxu0 %v1986
  %2006 = vmatpush.msra.mxu0 %v1985
  %2007 = vmatpush.msra.mxu0 %v1984
  %2008 = vmatmul.f32.gmra.mxu0 %v1701
  %v2009 = vpop.f32.mrf.mxu0
  %v2010 = vadd.f32 0.0, %v2009
  %2011 = vmatmul.f32.gmra.mxu0 %v1990
  %v2012 = vpop.f32.mrf.mxu0
  %v2013 = vadd.f32 0.0, %v2012
  %2014 = vdwg.mxu0
  %v2015 = vadd.f32 %v1982, %v2010
  %v2016 = vadd.f32 %v1983, %v2013
  %v2017 = vld [vmem:[%s4] sm:$0x3]
  %v2018 = vld [vmem:[%s17] sm:$0x1]
  %v2020 = vperm.slane %v2018, 0
  %vm2022 = vcmask 121856
  %v2024 = vsel %vm2022, %v2017, 0
  %v2027 = vsel %vm111, %v2016, 0
  %2029 = vmatpush.msra.mxu0 0.0
  %2030 = vmatpush.msra.mxu0 0.0
  %2031 = vmatpush.msra.mxu0 0.0
  %2032 = vmatpush.msra.mxu0 0.0
  %2033 = vmatpush.msra.mxu0 0.0
  %2034 = vmatpush.msra.mxu0 0.0
  %2035 = vmatpush.msra.mxu0 0.0
  %2036 = vmatpush.msra.mxu0 0.0
  %2037 = vmatpush.msra.mxu0 0.0
  %2038 = vmatpush.msra.mxu0 0.0
  %2039 = vmatpush.msra.mxu0 0.0
  %2040 = vmatpush.msra.mxu0 0.0
  %2041 = vmatpush.msra.mxu0 0.0
  %2042 = vmatpush.msra.mxu0 0.0
  %2043 = vmatpush.msra.mxu0 %v2027
  %2044 = vmatpush.msra.mxu0 %v2015
  %2045 = vmatmul.f32.gmra.mxu0 %v2024
  %v2046 = vpop.f32.mrf.mxu0
  %v2047 = vadd.f32 %v2020, %v2046
  %2048 = vdwg.mxu0
  %v2049 = vld [vmem:[%s18] sm:$0x1]
  %v2050 = vld [vmem:[%s19] sm:$0x1]
  %v2051 = vsel %vm1810, %v2047, 0.0
  %v2052 = vrot.slane %v2051, 4
  %v2053 = vadd.f32 %v2051, %v2052
  %v2054 = vrot.slane %v2053, 2
  %v2055 = vadd.f32 %v2053, %v2054
  %v2056 = vrot.slane %v2055, 1
  %v2057 = vadd.f32 %v2055, %v2056
  %v2058 = vmul.f32 %v2057, 0.5
  %v2059 = vsub.f32 %v2047, %v2058
  %v2060 = vmul.f32 %v2059, %v2059
  %v2061 = vsel %vm1810, %v2060, 0.0
  %v2062 = vrot.slane %v2061, 4
  %v2063 = vadd.f32 %v2061, %v2062
  %v2064 = vrot.slane %v2063, 2
  %v2065 = vadd.f32 %v2063, %v2064
  %v2066 = vrot.slane %v2065, 1
  %v2067 = vadd.f32 %v2065, %v2066
  %v2068 = vmul.f32 %v2067, 0.5
  %v2069 = vadd.f32 %v2068, 1e-05
  %v2070 = vrsqrt.pop %v2069
  %v2071 = vmul.f32 %v2070, %v2069
  %v2072 = vmul.f32 %v2071, %v2070
  %v2073 = vmul.f32 0.5, %v2072
  %v2074 = vsub.f32 1.5, %v2073
  %v2075 = vmul.f32 %v2070, %v2074
  %vm2076 = vweird.f32 %v2069
  %vm2077 = vweird.f32 %v2070
  %vm2078 = vmor %vm2076, %vm2077
  %v2079 = vsel %vm2078, %v2070, %v2075
  %v2080 = vmul.f32 %v2079, %v2049
  %v2081 = vperm.slane %v2080, 0
  %v2082 = vmul.f32 %v2059, %v2081
  %v2084 = vperm.slane %v2050, 0
  %v2086 = vadd.f32 %v2082, %v2084
  %v2087 = vld [vmem:[%s20] sm:$0xff]
  %v2088 = vld [vmem:[%s20 + $0x8] sm:$0xff]
  %v2089 = vld [vmem:[%s20 + $0x10] sm:$0xff]
  %v2090 = vld [vmem:[%s20 + $0x18] sm:$0xff]
  %v2091 = vld [vmem:[%s20 + $0x20] sm:$0xff]
  %v2092 = vld [vmem:[%s20 + $0x28] sm:$0xff]
  %v2093 = vld [vmem:[%s20 + $0x30] sm:$0xff]
  %v2094 = vld [vmem:[%s20 + $0x38] sm:$0xff]
  %v2095 = vld [vmem:[%s20 + $0x40] sm:$0xff]
  %v2096 = vld [vmem:[%s20 + $0x48] sm:$0xff]
  %v2097 = vld [vmem:[%s20 + $0x50] sm:$0xff]
  %v2098 = vld [vmem:[%s20 + $0x58] sm:$0xff]
  %v2099 = vld [vmem:[%s20 + $0x60] sm:$0xff]
  %v2100 = vld [vmem:[%s20 + $0x68] sm:$0xff]
  %v2101 = vld [vmem:[%s20 + $0x70] sm:$0xff]
  %v2102 = vld [vmem:[%s20 + $0x78] sm:$0xff]
  %v2103 = vld [vmem:[%s21] sm:$0x1]
  %v2105 = vperm.slane %v2103, 0
  %2107 = vmatpush.msra.mxu0 %v2102
  %2108 = vmatpush.msra.mxu0 %v2101
  %2109 = vmatpush.msra.mxu0 %v2100
  %2110 = vmatpush.msra.mxu0 %v2099
  %2111 = vmatpush.msra.mxu0 %v2098
  %2112 = vmatpush.msra.mxu0 %v2097
  %2113 = vmatpush.msra.mxu0 %v2096
  %2114 = vmatpush.msra.mxu0 %v2095
  %2115 = vmatpush.msra.mxu0 %v2094
  %2116 = vmatpush.msra.mxu0 %v2093
  %2117 = vmatpush.msra.mxu0 %v2092
  %2118 = vmatpush.msra.mxu0 %v2091
  %2119 = vmatpush.msra.mxu0 %v2090
  %2120 = vmatpush.msra.mxu0 %v2089
  %2121 = vmatpush.msra.mxu0 %v2088
  %2122 = vmatpush.msra.mxu0 %v2087
  %2123 = vmatmul.f32.gmra.mxu0 %v2086
  %v2124 = vpop.f32.mrf.mxu0
  %v2125 = vadd.f32 %v2105, %v2124
  %2126 = vdwg.mxu0
  %v2127 = vld [vmem:[%s22] sm:$0x1]
  %v2128 = vld [vmem:[%s23] sm:$0x1]
  %vm2129 = vcmask 517120
  %v2130 = vsel %vm2129, %v2125, 0.0
  %v2131 = vrot.slane %v2130, 4
  %v2132 = vadd.f32 %v2130, %v2131
  %v2133 = vrot.slane %v2132, 2
  %v2134 = vadd.f32 %v2132, %v2133
  %v2135 = vrot.slane %v2134, 1
  %v2136 = vadd.f32 %v2134, %v2135
  %v2137 = vmul.f32 %v2136, 0.5
  %v2138 = vsub.f32 %v2125, %v2137
  %v2139 = vmul.f32 %v2138, %v2138
  %v2140 = vsel %vm2129, %v2139, 0.0
  %v2141 = vrot.slane %v2140, 4
  %v2142 = vadd.f32 %v2140, %v2141
  %v2143 = vrot.slane %v2142, 2
  %v2144 = vadd.f32 %v2142, %v2143
  %v2145 = vrot.slane %v2144, 1
  %v2146 = vadd.f32 %v2144, %v2145
  %v2147 = vmul.f32 %v2146, 0.5
  %v2148 = vadd.f32 %v2147, 1e-05
  %v2149 = vrsqrt.pop %v2148
  %v2150 = vmul.f32 %v2149, %v2148
  %v2151 = vmul.f32 %v2150, %v2149
  %v2152 = vmul.f32 0.5, %v2151
  %v2153 = vsub.f32 1.5, %v2152
  %v2154 = vmul.f32 %v2149, %v2153
  %vm2155 = vweird.f32 %v2148
  %vm2156 = vweird.f32 %v2149
  %vm2157 = vmor %vm2155, %vm2156
  %v2158 = vsel %vm2157, %v2149, %v2154
  %v2159 = vmul.f32 %v2158, %v2127
  %v2160 = vperm.slane %v2159, 0
  %v2161 = vmul.f32 %v2138, %v2160
  %v2163 = vperm.slane %v2128, 0
  %v2165 = vadd.f32 %v2161, %v2163
  %v2166 = vld [vmem:[%s24] sm:$0xff]
  %v2167 = vld [vmem:[%s24 + $0x8] sm:$0xff]
  %v2168 = vld [vmem:[%s24 + $0x10] sm:$0xff]
  %v2169 = vld [vmem:[%s24 + $0x18] sm:$0xff]
  %v2170 = vld [vmem:[%s24 + $0x20] sm:$0xff]
  %v2171 = vld [vmem:[%s24 + $0x28] sm:$0xff]
  %v2172 = vld [vmem:[%s24 + $0x30] sm:$0xff]
  %v2173 = vld [vmem:[%s24 + $0x38] sm:$0xff]
  %v2174 = vld [vmem:[%s25] sm:$0x1]
  %v2176 = vperm.slane %v2174, 0
  %v2179 = vsel %vm840, %v2165, 0
  %2181 = vmatpush.msra.mxu0 0.0
  %2182 = vmatpush.msra.mxu0 0.0
  %2183 = vmatpush.msra.mxu0 0.0
  %2184 = vmatpush.msra.mxu0 0.0
  %2185 = vmatpush.msra.mxu0 0.0
  %2186 = vmatpush.msra.mxu0 0.0
  %2187 = vmatpush.msra.mxu0 0.0
  %2188 = vmatpush.msra.mxu0 0.0
  %2189 = vmatpush.msra.mxu0 %v2173
  %2190 = vmatpush.msra.mxu0 %v2172
  %2191 = vmatpush.msra.mxu0 %v2171
  %2192 = vmatpush.msra.mxu0 %v2170
  %2193 = vmatpush.msra.mxu0 %v2169
  %2194 = vmatpush.msra.mxu0 %v2168
  %2195 = vmatpush.msra.mxu0 %v2167
  %2196 = vmatpush.msra.mxu0 %v2166
  %2197 = vmatmul.f32.gmra.mxu0 %v2179
  %v2198 = vpop.f32.mrf.mxu0
  %v2199 = vadd.f32 %v2176, %v2198
  %2200 = vdwg.mxu0
  %v2201 = vld [vmem:[%s26] sm:$0xff]
  %v2202 = vld [vmem:[%s26 + $0x8] sm:$0xff]
  %v2203 = vld [vmem:[%s26 + $0x10] sm:$0xff]
  %v2204 = vld [vmem:[%s26 + $0x18] sm:$0xff]
  %v2205 = vld [vmem:[%s27] sm:$0x1]
  %v2207 = vperm.slane %v2205, 0
  %v2210 = vsel %vm410, %v2199, 0
  %2212 = vmatpush.msra.mxu0 0.0
  %2213 = vmatpush.msra.mxu0 0.0
  %2214 = vmatpush.msra.mxu0 0.0
  %2215 = vmatpush.msra.mxu0 0.0
  %2216 = vmatpush.msra.mxu0 0.0
  %2217 = vmatpush.msra.mxu0 0.0
  %2218 = vmatpush.msra.mxu0 0.0
  %2219 = vmatpush.msra.mxu0 0.0
  %2220 = vmatpush.msra.mxu0 0.0
  %2221 = vmatpush.msra.mxu0 0.0
  %2222 = vmatpush.msra.mxu0 0.0
  %2223 = vmatpush.msra.mxu0 0.0
  %2224 = vmatpush.msra.mxu0 %v2204
  %2225 = vmatpush.msra.mxu0 %v2203
  %2226 = vmatpush.msra.mxu0 %v2202
  %2227 = vmatpush.msra.mxu0 %v2201
  %2228 = vmatmul.f32.gmra.mxu0 %v2210
  %v2229 = vpop.f32.mrf.mxu0
  %v2230 = vadd.f32 %v2207, %v2229
  %2231 = vdwg.mxu0
  %2232 = vst.msk [vmem:[%s28] sm:$0x3] %vm2129, %v2230
  // Predicated region
  $region114: #{pose_encoder_conv_forward.1} parent=0 // pred_check
    _
  $region115: #{pose_encoder_conv_forward.1} parent=0 // pred_check_branch
    %2234 = sbr.rel (0) target = $region117
  $region116: #{pose_encoder_conv_forward.1} parent=0 // pred_region
    _
  $region117: #{pose_encoder_conv_forward.1} parent=0 // pred_fallthru
    _
  // Predicated region
  $region118: #{pose_encoder_conv_forward.1} parent=0 // pred_check
    _
  $region119: #{pose_encoder_conv_forward.1} parent=0 // pred_check_branch
    %2236 = sbr.rel (0) target = $region121
  $region120: #{pose_encoder_conv_forward.1} parent=0 // pred_region
    _
  $region121: #{pose_encoder_conv_forward.1} parent=0 // pred_fallthru
    _

</llo_original>
